<compile_context>
chip_gen: v6e
topology: v6e:2x2x1
jax: 0.10.0
libtpu: 0.0.40
codegen_flags: <defaults>
</compile_context>

<pallas_src>
import jax
import jax.numpy as jnp
from jax.experimental import pallas as pl
from jax.experimental.pallas import tpu as pltpu


def _downsample_conv_kernel(x_ref, w_ref, b_ref, o_ref):
    """One image per grid step.

    x_ref: (4, Hq, Wq, C)  phase-split zero-padded NHWC image,
                           x_ref[2*ph+pw, i, j, c] = x_pad[2*i+ph, 2*j+pw, c]
    w_ref: (9, C, C)       weight, w_ref[3*kh+kw, ci, co]
    b_ref: (1, C)          bias
    o_ref: (Ho*Wo, C)      output rows for this image (row = ho*Wo + wo)
    """
    _, hq, wq, c = x_ref.shape
    ho, wo = hq - 1, wq - 1

    acc = jnp.zeros((ho * wo, c), jnp.float32)
    for kh in range(3):                       # static Python loops -> unrolled
        ph, dh = kh % 2, kh // 2
        for kw in range(3):
            pw, dw = kw % 2, kw // 2
            # tap(kh, kw)[i, j, ci] = x_pad[2*i + kh, 2*j + kw, ci]
            tap = x_ref[2 * ph + pw, dh:dh + ho, dw:dw + wo, :]
            acc = acc + jnp.dot(tap.reshape(ho * wo, c),
                                w_ref[3 * kh + kw],
                                preferred_element_type=jnp.float32)
    o_ref[...] = (acc + b_ref[...]).astype(o_ref.dtype)


def downsample_with_asymmetric_padding(x_nchw, weight, bias):
    """Forward pass of Downsample_with_asymmetric_padding (dim=2).

    x_nchw:  (N, C, H, W) float32
    weight:  (C, C, 3, 3) float32   (out_ch, in_ch, kh, kw) -- PyTorch layout
    bias:    (C,) float32
    returns: (N, C, Ho, Wo), Ho = floor((H+1-3)/2)+1, Wo likewise.
    """
    N, C, H, W = x_nchw.shape
    K, S = 3, 2
    Ho = (H + 1 - K) // S + 1
    Wo = (W + 1 - K) // S + 1
    Hq, Wq = Ho + 1, Wo + 1                   # per-phase spatial extent

    # ---- single fused XLA rearrangement of the activation -------------------
    # NCHW -> NHWC, zero-pad spatial dims up to (2*Hq, 2*Wq).  This covers the
    # module's asymmetric (0, 1) pad; the (at most one) extra zero row/col is
    # never read by any tap, so the result is unchanged.
    x = jnp.transpose(x_nchw, (0, 2, 3, 1))
    x = jnp.pad(x, ((0, 0), (0, 2 * Hq - H), (0, 2 * Wq - W), (0, 0)))
    # space-to-phase: phases[n, 2*ph+pw, i, j, c] = x_pad[n, 2*i+ph, 2*j+pw, c]
    phases = (x.reshape(N, Hq, 2, Wq, 2, C)
               .transpose(0, 2, 4, 1, 3, 5)
               .reshape(N, 4, Hq, Wq, C))

    # weight (co, ci, kh, kw) -> (3*kh+kw, ci, co); bias -> (1, C)
    w_mat = jnp.transpose(weight, (2, 3, 1, 0)).reshape(9, C, C)
    b_mat = bias.reshape(1, C)

    flops = 2 * N * Ho * Wo * 9 * C * C
    bytes_accessed = 4 * (phases.size + w_mat.size + b_mat.size + N * Ho * Wo * C)

    out = pl.pallas_call(
        _downsample_conv_kernel,
        out_shape=jax.ShapeDtypeStruct((N, Ho * Wo, C), jnp.float32),
        grid_spec=pltpu.PrefetchScalarGridSpec(
            num_scalar_prefetch=0,
            grid=(N,),
            in_specs=[
                pl.BlockSpec((None, 4, Hq, Wq, C), lambda n: (n, 0, 0, 0, 0)),
                pl.BlockSpec((9, C, C), lambda n: (0, 0, 0)),   # grid-invariant
                pl.BlockSpec((1, C), lambda n: (0, 0)),         # grid-invariant
            ],
            out_specs=pl.BlockSpec((None, Ho * Wo, C), lambda n: (n, 0, 0)),
        ),
        compiler_params=pltpu.CompilerParams(
            dimension_semantics=("parallel",)),   # v7x: images sharded over 2 TCs
        cost_estimate=pl.CostEstimate(
            flops=flops, transcendentals=0, bytes_accessed=bytes_accessed),
    )(phases, w_mat, b_mat)

    out = out.reshape(N, Ho, Wo, C)
    return jnp.transpose(out, (0, 3, 1, 2))       # back to NCHW (PyTorch contract)


if __name__ == "__main__":
    key = jax.random.PRNGKey(0)
    kx, kw, kb = jax.random.split(key, 3)

    N, C, H, W = 2, 4, 16, 16
    x = jax.random.normal(kx, (N, C, H, W), dtype=jnp.float32)

    # deterministic parameter init (same shapes/bounds as nn.Conv2d defaults)
    fan_in = C * 3 * 3
    bound = 1.0 / (fan_in ** 0.5)
    weight = jax.random.uniform(kw, (C, C, 3, 3), minval=-bound, maxval=bound,
                                dtype=jnp.float32)
    bias = jax.random.uniform(kb, (C,), minval=-bound, maxval=bound,
                              dtype=jnp.float32)

    fwd = jax.jit(downsample_with_asymmetric_padding)
    out = fwd(x, weight, bias)
    out = jax.block_until_ready(out)

    # sanity-check against XLA's reference conv on the same padded input
    xp = jnp.pad(x, ((0, 0), (0, 0), (0, 1), (0, 1)))
    ref = jax.lax.conv_general_dilated(
        xp, weight, window_strides=(2, 2), padding="VALID",
        dimension_numbers=("NCHW", "OIHW", "NCHW")) + bias[None, :, None, None]

    assert out.shape == (N, C, 8, 8), out.shape
    assert jnp.allclose(out, ref, atol=1e-4, rtol=1e-4)
    print("KERNEL_OK")
</pallas_src>

<mosaic_0001>
module attributes {stable_mosaic.version = 11 : i64} {
  func.func @_downsample_conv_kernel(%arg0: i32, %arg1: memref<1x4x9x9x4xf32, #tpu.memory_space<vmem>>, %arg2: memref<9x4x4xf32, #tpu.memory_space<vmem>>, %arg3: memref<1x4xf32, #tpu.memory_space<vmem>>, %arg4: memref<1x64x4xf32, #tpu.memory_space<vmem>>) attributes {dimension_semantics = [#tpu.dimension_semantics<parallel>], iteration_bounds = array<i64: 2>, scalar_prefetch = 0 : i64, scratch_operands = 0 : i64, tpu.core_type = #tpu.core_type<tc>, window_params = [{transform_indices = @transform_0, window_bounds = array<i64: 1, 4, 9, 9, 4>}, {pipeline_mode = #tpu.pipeline_mode<synchronous>, transform_indices = @transform_1, window_bounds = array<i64: 9, 4, 4>}, {pipeline_mode = #tpu.pipeline_mode<synchronous>, transform_indices = @transform_2, window_bounds = array<i64: 1, 4>}, {transform_indices = @transform_3, window_bounds = array<i64: 1, 64, 4>}]} {
    %cst = arith.constant 0.000000e+00 : f32
    %0 = vector.broadcast %cst : f32 to vector<64x4xf32>
    %c0 = arith.constant 0 : index
    %c0_0 = arith.constant 0 : index
    %c0_1 = arith.constant 0 : index
    %c0_2 = arith.constant 0 : index
    %c0_3 = arith.constant 0 : index
    %1 = vector.load %arg1[%c0, %c0_0, %c0_1, %c0_2, %c0_3] : memref<1x4x9x9x4xf32, #tpu.memory_space<vmem>>, vector<1x1x8x8x4xf32>
    %2 = vector.shape_cast %1 : vector<1x1x8x8x4xf32> to vector<8x8x4xf32>
    %3 = vector.shape_cast %2 : vector<8x8x4xf32> to vector<64x4xf32>
    %c0_4 = arith.constant 0 : index
    %c0_5 = arith.constant 0 : index
    %c0_6 = arith.constant 0 : index
    %4 = vector.load %arg2[%c0_4, %c0_5, %c0_6] : memref<9x4x4xf32, #tpu.memory_space<vmem>>, vector<1x4x4xf32>
    %5 = vector.shape_cast %4 : vector<1x4x4xf32> to vector<4x4xf32>
    %cst_7 = arith.constant dense<0.000000e+00> : vector<64x4xf32>
    %6 = tpu.matmul %3, %5, %cst_7 {dimension_numbers = #tpu.dot_dimension_numbers<[1], [0], [0], [1], [0, 0, 1, 1], [], []>} : vector<64x4xf32>, vector<4x4xf32>, vector<64x4xf32> -> vector<64x4xf32>
    %7 = arith.addf %0, %6 : vector<64x4xf32>
    %c0_8 = arith.constant 0 : index
    %c1 = arith.constant 1 : index
    %c0_9 = arith.constant 0 : index
    %c0_10 = arith.constant 0 : index
    %c0_11 = arith.constant 0 : index
    %8 = vector.load %arg1[%c0_8, %c1, %c0_9, %c0_10, %c0_11] : memref<1x4x9x9x4xf32, #tpu.memory_space<vmem>>, vector<1x1x8x8x4xf32>
    %9 = vector.shape_cast %8 : vector<1x1x8x8x4xf32> to vector<8x8x4xf32>
    %10 = vector.shape_cast %9 : vector<8x8x4xf32> to vector<64x4xf32>
    %c1_12 = arith.constant 1 : index
    %c0_13 = arith.constant 0 : index
    %c0_14 = arith.constant 0 : index
    %11 = vector.load %arg2[%c1_12, %c0_13, %c0_14] : memref<9x4x4xf32, #tpu.memory_space<vmem>>, vector<1x4x4xf32>
    %12 = vector.shape_cast %11 : vector<1x4x4xf32> to vector<4x4xf32>
    %cst_15 = arith.constant dense<0.000000e+00> : vector<64x4xf32>
    %13 = tpu.matmul %10, %12, %cst_15 {dimension_numbers = #tpu.dot_dimension_numbers<[1], [0], [0], [1], [0, 0, 1, 1], [], []>} : vector<64x4xf32>, vector<4x4xf32>, vector<64x4xf32> -> vector<64x4xf32>
    %14 = arith.addf %7, %13 : vector<64x4xf32>
    %c0_16 = arith.constant 0 : index
    %c0_17 = arith.constant 0 : index
    %c0_18 = arith.constant 0 : index
    %c1_19 = arith.constant 1 : index
    %c0_20 = arith.constant 0 : index
    %15 = vector.load %arg1[%c0_16, %c0_17, %c0_18, %c1_19, %c0_20] : memref<1x4x9x9x4xf32, #tpu.memory_space<vmem>>, vector<1x1x8x8x4xf32>
    %16 = vector.shape_cast %15 : vector<1x1x8x8x4xf32> to vector<8x8x4xf32>
    %17 = vector.shape_cast %16 : vector<8x8x4xf32> to vector<64x4xf32>
    %c2 = arith.constant 2 : index
    %c0_21 = arith.constant 0 : index
    %c0_22 = arith.constant 0 : index
    %18 = vector.load %arg2[%c2, %c0_21, %c0_22] : memref<9x4x4xf32, #tpu.memory_space<vmem>>, vector<1x4x4xf32>
    %19 = vector.shape_cast %18 : vector<1x4x4xf32> to vector<4x4xf32>
    %cst_23 = arith.constant dense<0.000000e+00> : vector<64x4xf32>
    %20 = tpu.matmul %17, %19, %cst_23 {dimension_numbers = #tpu.dot_dimension_numbers<[1], [0], [0], [1], [0, 0, 1, 1], [], []>} : vector<64x4xf32>, vector<4x4xf32>, vector<64x4xf32> -> vector<64x4xf32>
    %21 = arith.addf %14, %20 : vector<64x4xf32>
    %c0_24 = arith.constant 0 : index
    %c2_25 = arith.constant 2 : index
    %c0_26 = arith.constant 0 : index
    %c0_27 = arith.constant 0 : index
    %c0_28 = arith.constant 0 : index
    %22 = vector.load %arg1[%c0_24, %c2_25, %c0_26, %c0_27, %c0_28] : memref<1x4x9x9x4xf32, #tpu.memory_space<vmem>>, vector<1x1x8x8x4xf32>
    %23 = vector.shape_cast %22 : vector<1x1x8x8x4xf32> to vector<8x8x4xf32>
    %24 = vector.shape_cast %23 : vector<8x8x4xf32> to vector<64x4xf32>
    %c3 = arith.constant 3 : index
    %c0_29 = arith.constant 0 : index
    %c0_30 = arith.constant 0 : index
    %25 = vector.load %arg2[%c3, %c0_29, %c0_30] : memref<9x4x4xf32, #tpu.memory_space<vmem>>, vector<1x4x4xf32>
    %26 = vector.shape_cast %25 : vector<1x4x4xf32> to vector<4x4xf32>
    %cst_31 = arith.constant dense<0.000000e+00> : vector<64x4xf32>
    %27 = tpu.matmul %24, %26, %cst_31 {dimension_numbers = #tpu.dot_dimension_numbers<[1], [0], [0], [1], [0, 0, 1, 1], [], []>} : vector<64x4xf32>, vector<4x4xf32>, vector<64x4xf32> -> vector<64x4xf32>
    %28 = arith.addf %21, %27 : vector<64x4xf32>
    %c0_32 = arith.constant 0 : index
    %c3_33 = arith.constant 3 : index
    %c0_34 = arith.constant 0 : index
    %c0_35 = arith.constant 0 : index
    %c0_36 = arith.constant 0 : index
    %29 = vector.load %arg1[%c0_32, %c3_33, %c0_34, %c0_35, %c0_36] : memref<1x4x9x9x4xf32, #tpu.memory_space<vmem>>, vector<1x1x8x8x4xf32>
    %30 = vector.shape_cast %29 : vector<1x1x8x8x4xf32> to vector<8x8x4xf32>
    %31 = vector.shape_cast %30 : vector<8x8x4xf32> to vector<64x4xf32>
    %c4 = arith.constant 4 : index
    %c0_37 = arith.constant 0 : index
    %c0_38 = arith.constant 0 : index
    %32 = vector.load %arg2[%c4, %c0_37, %c0_38] : memref<9x4x4xf32, #tpu.memory_space<vmem>>, vector<1x4x4xf32>
    %33 = vector.shape_cast %32 : vector<1x4x4xf32> to vector<4x4xf32>
    %cst_39 = arith.constant dense<0.000000e+00> : vector<64x4xf32>
    %34 = tpu.matmul %31, %33, %cst_39 {dimension_numbers = #tpu.dot_dimension_numbers<[1], [0], [0], [1], [0, 0, 1, 1], [], []>} : vector<64x4xf32>, vector<4x4xf32>, vector<64x4xf32> -> vector<64x4xf32>
    %35 = arith.addf %28, %34 : vector<64x4xf32>
    %c0_40 = arith.constant 0 : index
    %c2_41 = arith.constant 2 : index
    %c0_42 = arith.constant 0 : index
    %c1_43 = arith.constant 1 : index
    %c0_44 = arith.constant 0 : index
    %36 = vector.load %arg1[%c0_40, %c2_41, %c0_42, %c1_43, %c0_44] : memref<1x4x9x9x4xf32, #tpu.memory_space<vmem>>, vector<1x1x8x8x4xf32>
    %37 = vector.shape_cast %36 : vector<1x1x8x8x4xf32> to vector<8x8x4xf32>
    %38 = vector.shape_cast %37 : vector<8x8x4xf32> to vector<64x4xf32>
    %c5 = arith.constant 5 : index
    %c0_45 = arith.constant 0 : index
    %c0_46 = arith.constant 0 : index
    %39 = vector.load %arg2[%c5, %c0_45, %c0_46] : memref<9x4x4xf32, #tpu.memory_space<vmem>>, vector<1x4x4xf32>
    %40 = vector.shape_cast %39 : vector<1x4x4xf32> to vector<4x4xf32>
    %cst_47 = arith.constant dense<0.000000e+00> : vector<64x4xf32>
    %41 = tpu.matmul %38, %40, %cst_47 {dimension_numbers = #tpu.dot_dimension_numbers<[1], [0], [0], [1], [0, 0, 1, 1], [], []>} : vector<64x4xf32>, vector<4x4xf32>, vector<64x4xf32> -> vector<64x4xf32>
    %42 = arith.addf %35, %41 : vector<64x4xf32>
    %c0_48 = arith.constant 0 : index
    %c0_49 = arith.constant 0 : index
    %c1_50 = arith.constant 1 : index
    %c0_51 = arith.constant 0 : index
    %c0_52 = arith.constant 0 : index
    %43 = vector.load %arg1[%c0_48, %c0_49, %c1_50, %c0_51, %c0_52] : memref<1x4x9x9x4xf32, #tpu.memory_space<vmem>>, vector<1x1x8x8x4xf32>
    %44 = vector.shape_cast %43 : vector<1x1x8x8x4xf32> to vector<8x8x4xf32>
    %45 = vector.shape_cast %44 : vector<8x8x4xf32> to vector<64x4xf32>
    %c6 = arith.constant 6 : index
    %c0_53 = arith.constant 0 : index
    %c0_54 = arith.constant 0 : index
    %46 = vector.load %arg2[%c6, %c0_53, %c0_54] : memref<9x4x4xf32, #tpu.memory_space<vmem>>, vector<1x4x4xf32>
    %47 = vector.shape_cast %46 : vector<1x4x4xf32> to vector<4x4xf32>
    %cst_55 = arith.constant dense<0.000000e+00> : vector<64x4xf32>
    %48 = tpu.matmul %45, %47, %cst_55 {dimension_numbers = #tpu.dot_dimension_numbers<[1], [0], [0], [1], [0, 0, 1, 1], [], []>} : vector<64x4xf32>, vector<4x4xf32>, vector<64x4xf32> -> vector<64x4xf32>
    %49 = arith.addf %42, %48 : vector<64x4xf32>
    %c0_56 = arith.constant 0 : index
    %c1_57 = arith.constant 1 : index
    %c1_58 = arith.constant 1 : index
    %c0_59 = arith.constant 0 : index
    %c0_60 = arith.constant 0 : index
    %50 = vector.load %arg1[%c0_56, %c1_57, %c1_58, %c0_59, %c0_60] : memref<1x4x9x9x4xf32, #tpu.memory_space<vmem>>, vector<1x1x8x8x4xf32>
    %51 = vector.shape_cast %50 : vector<1x1x8x8x4xf32> to vector<8x8x4xf32>
    %52 = vector.shape_cast %51 : vector<8x8x4xf32> to vector<64x4xf32>
    %c7 = arith.constant 7 : index
    %c0_61 = arith.constant 0 : index
    %c0_62 = arith.constant 0 : index
    %53 = vector.load %arg2[%c7, %c0_61, %c0_62] : memref<9x4x4xf32, #tpu.memory_space<vmem>>, vector<1x4x4xf32>
    %54 = vector.shape_cast %53 : vector<1x4x4xf32> to vector<4x4xf32>
    %cst_63 = arith.constant dense<0.000000e+00> : vector<64x4xf32>
    %55 = tpu.matmul %52, %54, %cst_63 {dimension_numbers = #tpu.dot_dimension_numbers<[1], [0], [0], [1], [0, 0, 1, 1], [], []>} : vector<64x4xf32>, vector<4x4xf32>, vector<64x4xf32> -> vector<64x4xf32>
    %56 = arith.addf %49, %55 : vector<64x4xf32>
    %c0_64 = arith.constant 0 : index
    %c0_65 = arith.constant 0 : index
    %c1_66 = arith.constant 1 : index
    %c1_67 = arith.constant 1 : index
    %c0_68 = arith.constant 0 : index
    %57 = vector.load %arg1[%c0_64, %c0_65, %c1_66, %c1_67, %c0_68] : memref<1x4x9x9x4xf32, #tpu.memory_space<vmem>>, vector<1x1x8x8x4xf32>
    %58 = vector.shape_cast %57 : vector<1x1x8x8x4xf32> to vector<8x8x4xf32>
    %59 = vector.shape_cast %58 : vector<8x8x4xf32> to vector<64x4xf32>
    %c8 = arith.constant 8 : index
    %c0_69 = arith.constant 0 : index
    %c0_70 = arith.constant 0 : index
    %60 = vector.load %arg2[%c8, %c0_69, %c0_70] : memref<9x4x4xf32, #tpu.memory_space<vmem>>, vector<1x4x4xf32>
    %61 = vector.shape_cast %60 : vector<1x4x4xf32> to vector<4x4xf32>
    %cst_71 = arith.constant dense<0.000000e+00> : vector<64x4xf32>
    %62 = tpu.matmul %59, %61, %cst_71 {dimension_numbers = #tpu.dot_dimension_numbers<[1], [0], [0], [1], [0, 0, 1, 1], [], []>} : vector<64x4xf32>, vector<4x4xf32>, vector<64x4xf32> -> vector<64x4xf32>
    %63 = arith.addf %56, %62 : vector<64x4xf32>
    %c0_72 = arith.constant 0 : index
    %c0_73 = arith.constant 0 : index
    %64 = vector.load %arg3[%c0_72, %c0_73] : memref<1x4xf32, #tpu.memory_space<vmem>>, vector<1x4xf32>
    %65 = vector.broadcast %64 : vector<1x4xf32> to vector<64x4xf32>
    %66 = arith.addf %63, %65 : vector<64x4xf32>
    %c0_74 = arith.constant 0 : index
    %c0_75 = arith.constant 0 : index
    %c0_76 = arith.constant 0 : index
    %67 = vector.load %arg4[%c0_74, %c0_75, %c0_76] : memref<1x64x4xf32, #tpu.memory_space<vmem>>, vector<1x64x4xf32>
    %68 = vector.shape_cast %67 : vector<1x64x4xf32> to vector<64x4xf32>
    %69 = vector.shape_cast %66 : vector<64x4xf32> to vector<1x64x4xf32>
    tpu.vector_store %arg4[%c0_74, %c0_75, %c0_76], %69 {strides = array<i32>} : memref<1x64x4xf32, #tpu.memory_space<vmem>>, vector<1x64x4xf32>,
    return
  }
  func.func @transform_0(%arg0: i32) -> (i32, i32, i32, i32, i32) {
    %c0_i32 = arith.constant 0 : i32
    %c0_i32_0 = arith.constant 0 : i32
    %c0_i32_1 = arith.constant 0 : i32
    %c0_i32_2 = arith.constant 0 : i32
    %c0_i32_3 = arith.constant 0 : i32
    return %arg0, %c0_i32, %c0_i32_0, %c0_i32_1, %c0_i32_2 : i32, i32, i32, i32, i32
  }
  func.func @transform_1(%arg0: i32) -> (i32, i32, i32) {
    %c0_i32 = arith.constant 0 : i32
    %c0_i32_0 = arith.constant 0 : i32
    %c0_i32_1 = arith.constant 0 : i32
    %c0_i32_2 = arith.constant 0 : i32
    return %c0_i32, %c0_i32_0, %c0_i32_1 : i32, i32, i32
  }
  func.func @transform_2(%arg0: i32) -> (i32, i32) {
    %c0_i32 = arith.constant 0 : i32
    %c0_i32_0 = arith.constant 0 : i32
    %c0_i32_1 = arith.constant 0 : i32
    return %c0_i32, %c0_i32_0 : i32, i32
  }
  func.func @transform_3(%arg0: i32) -> (i32, i32, i32) {
    %c0_i32 = arith.constant 0 : i32
    %c0_i32_0 = arith.constant 0 : i32
    %c0_i32_1 = arith.constant 0 : i32
    return %arg0, %c0_i32, %c0_i32_0 : i32, i32, i32
  }
}

</mosaic_0001>

<llo_original>
// kernel: downsample_with_asymmetric_padding.1
$region0: #{downsample_with_asymmetric_padding.1}
  #allocation0 [shape = 'u32[]', space=smem, size = 0x4, offset = 0x4, fixed_abs, tag = 'smem constant byte address 0x4 - core index']
  #allocation1 [shape = 'u32[144,128]{1,0:T(1,128)}', space=vmem, size = 0x12000, scoped, tag = 'internal scratch']
  %s0 = inlined_call_operand.vmem [shape: f32[2,4,9,9,4], index: 0, kind: input, shape index: {}]
  %s1 = inlined_call_operand.vmem [shape: f32[9,4,4], index: 1, kind: input, shape index: {}]
  %s2 = inlined_call_operand.vmem [shape: f32[1,4], index: 2, kind: input, shape index: {}]
  %s3 = inlined_call_operand.vmem [shape: f32[2,64,4], index: 3, kind: output, shape index: {}]
  %s4 = sld [smem:[#allocation0]]
  $region45: #{downsample_with_asymmetric_padding.1} parent=0
    _
  %s6 = ssub.s32 1, %s4
  %s7 = scalar_select 0, %s6, %s4
  loop: start=0, step=1, limit=4
  $region2: #{downsample_with_asymmetric_padding.1} parent=0 // loop_pre_header
    _
  $region3: #{downsample_with_asymmetric_padding.1} parent=0 // loop_header
    %s9 = sphi 0, %s13
    %p10 = scmp.ge.s32.totalorder %s9, 4
    %s19 = sphi 0, %s21
    %s22 = sphi 0, %s19
    %s23 = sphi 0, %s22
    %s39 = sphi 0, %s23
    %s43 = sphi 0, %s43
    %s45 = sphi 0, %s43
    %s46 = sphi 0, %s45
    %s60 = sphi 0, %s46
    %s64 = sphi 0, %s64
    %s66 = sphi 0, %s64
    %s67 = sphi 0, %s66
    %s81 = sphi 0, %s67
    %s87 = sphi 0, %s89
    %s90 = sphi 0, %s87
    %s91 = sphi 0, %s90
    %s107 = sphi 0, %s91
  $region4: #{downsample_with_asymmetric_padding.1} parent=0 // loop_header_branch
    %12 = sbr.rel (%p10) target = $region8
  $region5: #{downsample_with_asymmetric_padding.1} parent=0 // loop_body
    %s14 = ssub.s32 %s9, 1
    %s15 = ssub.s32 %s9, 2
    %s16 = sadd.s32 %s9, 1
    %s17 = ssub.s32 %s9, %s16
    %p18 = scmp.eq.s32.totalorder %s17, 0
    %s20 = sadd.s32 %s19, 1
    %s21 = scalar_select %p18, %s19, %s20
    %p24 = pneg %p18
    %p25 = scmp.eq.s32.totalorder %s9, 1
    %p26 = por %p24, %p25
    %p27 = scmp.ne.s32.totalorder %s19, %s22
    %p28 = scmp.eq.s32.totalorder %s9, 0
    %p29 = por %p27, %p28
    %p30 = scmp.ne.s32.totalorder %s19, %s22
    %p31 = scmp.eq.s32.totalorder %s14, 1
    %p32 = por %p30, %p31
    %p33 = scmp.ne.s32.totalorder %s22, %s23
    %p34 = scmp.eq.s32.totalorder %s14, 0
    %p35 = por %p33, %p34
    %p36 = scmp.ne.s32.totalorder %s22, %s23
    %p37 = scmp.eq.s32.totalorder %s15, 1
    %p38 = por %p36, %p37
    %p40 = scmp.ne.s32.totalorder %s23, %s39
    %p41 = scmp.eq.s32.totalorder %s15, 0
    %p42 = por %p40, %p41
    %s44 = sadd.s32 %s43, 1
    %p47 = scmp.eq.s32.totalorder %s9, 1
    %p48 = scmp.ne.s32.totalorder %s43, %s45
    %p49 = scmp.eq.s32.totalorder %s9, 0
    %p50 = por %p48, %p49
    %p51 = scmp.ne.s32.totalorder %s43, %s45
    %p52 = scmp.eq.s32.totalorder %s14, 1
    %p53 = por %p51, %p52
    %p54 = scmp.ne.s32.totalorder %s45, %s46
    %p55 = scmp.eq.s32.totalorder %s14, 0
    %p56 = por %p54, %p55
    %p57 = scmp.ne.s32.totalorder %s45, %s46
    %p58 = scmp.eq.s32.totalorder %s15, 1
    %p59 = por %p57, %p58
    %p61 = scmp.ne.s32.totalorder %s46, %s60
    %p62 = scmp.eq.s32.totalorder %s15, 0
    %p63 = por %p61, %p62
    %s65 = sadd.s32 %s64, 1
    %p68 = scmp.eq.s32.totalorder %s9, 1
    %p69 = scmp.ne.s32.totalorder %s64, %s66
    %p70 = scmp.eq.s32.totalorder %s9, 0
    %p71 = por %p69, %p70
    %p72 = scmp.ne.s32.totalorder %s64, %s66
    %p73 = scmp.eq.s32.totalorder %s14, 1
    %p74 = por %p72, %p73
    %p75 = scmp.ne.s32.totalorder %s66, %s67
    %p76 = scmp.eq.s32.totalorder %s14, 0
    %p77 = por %p75, %p76
    %p78 = scmp.ne.s32.totalorder %s66, %s67
    %p79 = scmp.eq.s32.totalorder %s15, 1
    %p80 = por %p78, %p79
    %p82 = scmp.ne.s32.totalorder %s67, %s81
    %p83 = scmp.eq.s32.totalorder %s15, 0
    %p84 = por %p82, %p83
    %s85 = ssub.s32 %s9, %s16
    %p86 = scmp.eq.s32.totalorder %s85, 0
    %s88 = sadd.s32 %s87, 1
    %s89 = scalar_select %p86, %s87, %s88
    %p92 = pneg %p86
    %p93 = scmp.eq.s32.totalorder %s9, 1
    %p94 = por %p92, %p93
    %p95 = scmp.ne.s32.totalorder %s87, %s90
    %p96 = scmp.eq.s32.totalorder %s9, 0
    %p97 = por %p95, %p96
    %p98 = scmp.ne.s32.totalorder %s87, %s90
    %p99 = scmp.eq.s32.totalorder %s14, 1
    %p100 = por %p98, %p99
    %p101 = scmp.ne.s32.totalorder %s90, %s91
    %p102 = scmp.eq.s32.totalorder %s14, 0
    %p103 = por %p101, %p102
    %p104 = scmp.ne.s32.totalorder %s90, %s91
    %p105 = scmp.eq.s32.totalorder %s15, 1
    %p106 = por %p104, %p105
    %p108 = scmp.ne.s32.totalorder %s91, %s107
    %p109 = scmp.eq.s32.totalorder %s15, 0
    %p110 = por %p108, %p109
    %p111 = scmp.le.s32.totalorder 1, %s9
    %p112 = scmp.lt.s32.totalorder %s9, 3
    %p113 = pnand %p111, %p112
    %p114 = pneg %p113
    // Predicated region
    $region9: #{downsample_with_asymmetric_padding.1} parent=5 // pred_check
      _
    $region10: #{downsample_with_asymmetric_padding.1} parent=5 // pred_check_branch
      %116 = sbr.rel (%p113) target = $region12
    $region11: #{downsample_with_asymmetric_padding.1} parent=5 // pred_region
      %s117 = ssub.s32 %s9, 1
      // Predicated region
      $region13: #{downsample_with_asymmetric_padding.1} parent=11 // pred_check
        %p118 = pneg %p56
      $region14: #{downsample_with_asymmetric_padding.1} parent=11 // pred_check_branch
        %120 = sbr.rel (%p118) target = $region16
      $region15: #{downsample_with_asymmetric_padding.1} parent=11 // pred_region
        _
      $region16: #{downsample_with_asymmetric_padding.1} parent=11 // pred_fallthru
        _
      // Predicated region
      $region17: #{downsample_with_asymmetric_padding.1} parent=11 // pred_check
        %p121 = pneg %p77
      $region18: #{downsample_with_asymmetric_padding.1} parent=11 // pred_check_branch
        %123 = sbr.rel (%p121) target = $region20
      $region19: #{downsample_with_asymmetric_padding.1} parent=11 // pred_region
        _
      $region20: #{downsample_with_asymmetric_padding.1} parent=11 // pred_fallthru
        _
    $region12: #{downsample_with_asymmetric_padding.1} parent=5 // pred_fallthru
      _
    %p124 = scmp.lt.s32.totalorder %s9, 2
    // Predicated region
    $region21: #{downsample_with_asymmetric_padding.1} parent=5 // pred_check
      %p125 = pneg %p124
    $region22: #{downsample_with_asymmetric_padding.1} parent=5 // pred_check_branch
      %127 = sbr.rel (%p125) target = $region24
    $region23: #{downsample_with_asymmetric_padding.1} parent=5 // pred_region
      // Predicated region
      $region25: #{downsample_with_asymmetric_padding.1} parent=23 // pred_check
        %p128 = pneg %p29
      $region26: #{downsample_with_asymmetric_padding.1} parent=23 // pred_check_branch
        %130 = sbr.rel (%p128) target = $region28
      $region27: #{downsample_with_asymmetric_padding.1} parent=23 // pred_region
        %p131 = scmp.lt.s32.totalorder %s9, 1
        %s132 = scalar_select %p131, %s9, 1
        %s133 = smul.addr %s132, 72
        %s134 = smul.addr %s133, 8
        %s135 = scalar_lea.vmem %s0, %s134
      $region28: #{downsample_with_asymmetric_padding.1} parent=23 // pred_fallthru
        _
    $region24: #{downsample_with_asymmetric_padding.1} parent=5 // pred_fallthru
      _
    %p136 = scmp.le.s32.totalorder 1, %s9
    %p137 = scmp.lt.s32.totalorder %s9, 3
    %p138 = pnand %p136, %p137
    %p139 = pneg %p138
    // Predicated region
    $region29: #{downsample_with_asymmetric_padding.1} parent=5 // pred_check
      _
    $region30: #{downsample_with_asymmetric_padding.1} parent=5 // pred_check_branch
      %141 = sbr.rel (%p138) target = $region32
    $region31: #{downsample_with_asymmetric_padding.1} parent=5 // pred_region
      %s142 = ssub.s32 %s9, 1
      %p143 = scmp.lt.s32.totalorder %s14, 1
      %s144 = scalar_select %p143, %s14, 1
      %s145 = smul.addr %s144, 72
      %s146 = smul.addr %s145, 8
      %s147 = scalar_lea.vmem %s0, %s146
      %p148 = pneg %p35
      %p149 = pneg %p32
      %p150 = pneg %p56
      %p151 = pneg %p53
      %p152 = pneg %p77
      %p153 = pneg %p74
      %p154 = pneg %p103
      %p155 = pneg %p100
      %p156 = scmp.lt.s32.totalorder %s14, 1
      %s157 = scalar_select %p156, %s14, 1
      %s158 = smul.addr %s157, 8
      %s159 = smul.addr %s158, 8
      %s160 = scalar_lea.vmem %s3, %s159
      %p161 = scmp.lt.s32.totalorder %s14, 1
      %s162 = scalar_select %p161, %s14, 1
      %s163 = smul.addr %s162, 72
      %s164 = smul.addr %s163, 8
      %s165 = scalar_lea.vmem %s0, %s164
      %p166 = scmp.lt.s32.totalorder %s14, 1
      %s167 = scalar_select %p166, %s14, 1
      %s168 = smul.addr %s167, 8
      %s169 = smul.addr %s168, 8
      %s170 = scalar_lea.vmem %s3, %s169
      %v171 = vld [vmem:[%s165] sm:$0xff]
      %v172 = vld [vmem:[%s165 + $0x10] sm:$0xff]
      %v173 = vld [vmem:[%s165 + $0x20] sm:$0xff]
      %v174 = vld [vmem:[%s165 + $0x30] sm:$0xff]
      %v175 = vld [vmem:[%s165 + $0x40] sm:$0xff]
      %v176 = vld [vmem:[%s165 + $0x50] sm:$0xff]
      %v177 = vld [vmem:[%s165 + $0x60] sm:$0xff]
      %v178 = vld [vmem:[%s165 + $0x70] sm:$0xff]
      %v179 = vld [vmem:[%s1] sm:$0xf]
      %s180 = scalar_lea.vmem %s165, 144
      %v181 = vld [vmem:[%s180] sm:$0xff]
      %v182 = vld [vmem:[%s180 + $0x10] sm:$0xff]
      %v183 = vld [vmem:[%s180 + $0x20] sm:$0xff]
      %v184 = vld [vmem:[%s180 + $0x30] sm:$0xff]
      %v185 = vld [vmem:[%s180 + $0x40] sm:$0xff]
      %v186 = vld [vmem:[%s180 + $0x50] sm:$0xff]
      %v187 = vld [vmem:[%s180 + $0x60] sm:$0xff]
      %v188 = vld [vmem:[%s180 + $0x70] sm:$0xff]
      %s189 = scalar_lea.vmem %s1, 4
      %v190 = vld [vmem:[%s189] sm:$0xf]
      %vm191 = vcmask 31744
      %v193 = vsel %vm191, %v181, 0
      %v196 = vsel %vm191, %v182, 0
      %v199 = vsel %vm191, %v183, 0
      %v202 = vsel %vm191, %v184, 0
      %v205 = vsel %vm191, %v185, 0
      %v208 = vsel %vm191, %v186, 0
      %v211 = vsel %vm191, %v187, 0
      %v214 = vsel %vm191, %v188, 0
      %vm216 = vcmask 1043456
      %v218 = vsel %vm216, %v190, 0
      %220 = vmatprep.subr.mxu0 0.0
      %221 = vmatpush1.msra.mxu0 0.0
      %222 = vmatprep.subr.mxu0 0.0
      %223 = vmatpush1.msra.mxu0 0.0
      %224 = vmatprep.subr.mxu0 0.0
      %225 = vmatpush1.msra.mxu0 0.0
      %226 = vmatprep.subr.mxu0 0.0
      %227 = vmatpush1.msra.mxu0 0.0
      %228 = vmatprep.subr.mxu0 0.0
      %229 = vmatpush1.msra.mxu0 0.0
      %230 = vmatprep.subr.mxu0 0.0
      %231 = vmatpush1.msra.mxu0 0.0
      %232 = vmatprep.subr.mxu0 0.0
      %233 = vmatpush1.msra.mxu0 0.0
      %234 = vmatprep.subr.mxu0 0.0
      %235 = vmatpush1.msra.mxu0 0.0
      %236 = vmatprep.subr.mxu0 0.0
      %237 = vmatpush1.msra.mxu0 0.0
      %238 = vmatprep.subr.mxu0 0.0
      %239 = vmatpush1.msra.mxu0 0.0
      %240 = vmatprep.subr.mxu0 0.0
      %241 = vmatpush1.msra.mxu0 0.0
      %242 = vmatprep.subr.mxu0 0.0
      %243 = vmatpush1.msra.mxu0 0.0
      %244 = vmatprep.subr.mxu0 0.0
      %245 = vmatpush1.msra.mxu0 0.0
      %246 = vmatprep.subr.mxu0 0.0
      %247 = vmatpush1.msra.mxu0 0.0
      %248 = vmatprep.subr.mxu0 0.0
      %249 = vmatpush1.msra.mxu0 0.0
      %250 = vmatprep.subr.mxu0 0.0
      %251 = vmatpush1.msra.mxu0 %v218
      %252 = vmatprep.subr.mxu0 0.0
      %253 = vmatpush2.msra.mxu0 0.0
      %254 = vmatprep.subr.mxu0 0.0
      %255 = vmatpush2.msra.mxu0 0.0
      %256 = vmatprep.subr.mxu0 0.0
      %257 = vmatpush2.msra.mxu0 0.0
      %258 = vmatprep.subr.mxu0 0.0
      %259 = vmatpush2.msra.mxu0 0.0
      %260 = vmatprep.subr.mxu0 0.0
      %261 = vmatpush2.msra.mxu0 0.0
      %262 = vmatprep.subr.mxu0 0.0
      %263 = vmatpush2.msra.mxu0 0.0
      %264 = vmatprep.subr.mxu0 0.0
      %265 = vmatpush2.msra.mxu0 0.0
      %266 = vmatprep.subr.mxu0 0.0
      %267 = vmatpush2.msra.mxu0 0.0
      %268 = vmatprep.subr.mxu0 0.0
      %269 = vmatpush2.msra.mxu0 0.0
      %270 = vmatprep.subr.mxu0 0.0
      %271 = vmatpush2.msra.mxu0 0.0
      %272 = vmatprep.subr.mxu0 0.0
      %273 = vmatpush2.msra.mxu0 0.0
      %274 = vmatprep.subr.mxu0 0.0
      %275 = vmatpush2.msra.mxu0 0.0
      %276 = vmatprep.subr.mxu0 0.0
      %277 = vmatpush2.msra.mxu0 0.0
      %278 = vmatprep.subr.mxu0 0.0
      %279 = vmatpush2.msra.mxu0 0.0
      %280 = vmatprep.subr.mxu0 0.0
      %281 = vmatpush2.msra.mxu0 0.0
      %282 = vmatprep.subr.mxu0 0.0
      %283 = vmatpush2.msra.mxu0 0.0
      %284 = vmatprep.mubr.f32.mxu0 0.0
      %285 = vmatmul.mubr.f32.gmra.mxu0 %v193
      %v286 = vpop.f32.mrf.mxu0
      %v287 = vadd.f32 0.0, %v286
      %v288 = vpop.f32.mrf.mxu0
      %289 = vmatprep.mubr.f32.mxu0 0.0
      %290 = vmatmul.mubr.f32.gmra.mxu0 %v196
      %v291 = vpop.f32.mrf.mxu0
      %v292 = vadd.f32 0.0, %v291
      %v293 = vpop.f32.mrf.mxu0
      %294 = vmatprep.mubr.f32.mxu0 0.0
      %295 = vmatmul.mubr.f32.gmra.mxu0 %v199
      %v296 = vpop.f32.mrf.mxu0
      %v297 = vadd.f32 0.0, %v296
      %v298 = vpop.f32.mrf.mxu0
      %299 = vmatprep.mubr.f32.mxu0 0.0
      %300 = vmatmul.mubr.f32.gmra.mxu0 %v202
      %v301 = vpop.f32.mrf.mxu0
      %v302 = vadd.f32 0.0, %v301
      %v303 = vpop.f32.mrf.mxu0
      %304 = vmatprep.mubr.f32.mxu0 0.0
      %305 = vmatmul.mubr.f32.gmra.mxu0 %v205
      %v306 = vpop.f32.mrf.mxu0
      %v307 = vadd.f32 0.0, %v306
      %v308 = vpop.f32.mrf.mxu0
      %309 = vmatprep.mubr.f32.mxu0 0.0
      %310 = vmatmul.mubr.f32.gmra.mxu0 %v208
      %v311 = vpop.f32.mrf.mxu0
      %v312 = vadd.f32 0.0, %v311
      %v313 = vpop.f32.mrf.mxu0
      %314 = vmatprep.mubr.f32.mxu0 0.0
      %315 = vmatmul.mubr.f32.gmra.mxu0 %v211
      %v316 = vpop.f32.mrf.mxu0
      %v317 = vadd.f32 0.0, %v316
      %v318 = vpop.f32.mrf.mxu0
      %319 = vmatprep.mubr.f32.mxu0 0.0
      %320 = vmatmul.mubr.f32.gmra.mxu0 %v214
      %v321 = vpop.f32.mrf.mxu0
      %v322 = vadd.f32 0.0, %v321
      %v323 = vpop.f32.mrf.mxu0
      %324 = vdwg.mxu0
      %v326 = vsel %vm191, %v171, 0
      %v329 = vsel %vm191, %v172, 0
      %v332 = vsel %vm191, %v173, 0
      %v335 = vsel %vm191, %v174, 0
      %v338 = vsel %vm191, %v175, 0
      %v341 = vsel %vm191, %v176, 0
      %v344 = vsel %vm191, %v177, 0
      %v347 = vsel %vm191, %v178, 0
      %v350 = vsel %vm216, %v179, 0
      %352 = vmatprep.subr.mxu0 0.0
      %353 = vmatpush1.msra.mxu0 0.0
      %354 = vmatprep.subr.mxu0 0.0
      %355 = vmatpush1.msra.mxu0 0.0
      %356 = vmatprep.subr.mxu0 0.0
      %357 = vmatpush1.msra.mxu0 0.0
      %358 = vmatprep.subr.mxu0 0.0
      %359 = vmatpush1.msra.mxu0 0.0
      %360 = vmatprep.subr.mxu0 0.0
      %361 = vmatpush1.msra.mxu0 0.0
      %362 = vmatprep.subr.mxu0 0.0
      %363 = vmatpush1.msra.mxu0 0.0
      %364 = vmatprep.subr.mxu0 0.0
      %365 = vmatpush1.msra.mxu0 0.0
      %366 = vmatprep.subr.mxu0 0.0
      %367 = vmatpush1.msra.mxu0 0.0
      %368 = vmatprep.subr.mxu0 0.0
      %369 = vmatpush1.msra.mxu0 0.0
      %370 = vmatprep.subr.mxu0 0.0
      %371 = vmatpush1.msra.mxu0 0.0
      %372 = vmatprep.subr.mxu0 0.0
      %373 = vmatpush1.msra.mxu0 0.0
      %374 = vmatprep.subr.mxu0 0.0
      %375 = vmatpush1.msra.mxu0 0.0
      %376 = vmatprep.subr.mxu0 0.0
      %377 = vmatpush1.msra.mxu0 0.0
      %378 = vmatprep.subr.mxu0 0.0
      %379 = vmatpush1.msra.mxu0 0.0
      %380 = vmatprep.subr.mxu0 0.0
      %381 = vmatpush1.msra.mxu0 0.0
      %382 = vmatprep.subr.mxu0 0.0
      %383 = vmatpush1.msra.mxu0 %v350
      %384 = vmatprep.subr.mxu0 0.0
      %385 = vmatpush2.msra.mxu0 0.0
      %386 = vmatprep.subr.mxu0 0.0
      %387 = vmatpush2.msra.mxu0 0.0
      %388 = vmatprep.subr.mxu0 0.0
      %389 = vmatpush2.msra.mxu0 0.0
      %390 = vmatprep.subr.mxu0 0.0
      %391 = vmatpush2.msra.mxu0 0.0
      %392 = vmatprep.subr.mxu0 0.0
      %393 = vmatpush2.msra.mxu0 0.0
      %394 = vmatprep.subr.mxu0 0.0
      %395 = vmatpush2.msra.mxu0 0.0
      %396 = vmatprep.subr.mxu0 0.0
      %397 = vmatpush2.msra.mxu0 0.0
      %398 = vmatprep.subr.mxu0 0.0
      %399 = vmatpush2.msra.mxu0 0.0
      %400 = vmatprep.subr.mxu0 0.0
      %401 = vmatpush2.msra.mxu0 0.0
      %402 = vmatprep.subr.mxu0 0.0
      %403 = vmatpush2.msra.mxu0 0.0
      %404 = vmatprep.subr.mxu0 0.0
      %405 = vmatpush2.msra.mxu0 0.0
      %406 = vmatprep.subr.mxu0 0.0
      %407 = vmatpush2.msra.mxu0 0.0
      %408 = vmatprep.subr.mxu0 0.0
      %409 = vmatpush2.msra.mxu0 0.0
      %410 = vmatprep.subr.mxu0 0.0
      %411 = vmatpush2.msra.mxu0 0.0
      %412 = vmatprep.subr.mxu0 0.0
      %413 = vmatpush2.msra.mxu0 0.0
      %414 = vmatprep.subr.mxu0 0.0
      %415 = vmatpush2.msra.mxu0 0.0
      %416 = vmatprep.mubr.f32.mxu0 0.0
      %417 = vmatmul.mubr.f32.gmra.mxu0 %v326
      %v418 = vpop.f32.mrf.mxu0
      %v419 = vadd.f32 %v287, %v418
      %v420 = vpop.f32.mrf.mxu0
      %421 = vmatprep.mubr.f32.mxu0 0.0
      %422 = vmatmul.mubr.f32.gmra.mxu0 %v329
      %v423 = vpop.f32.mrf.mxu0
      %v424 = vadd.f32 %v292, %v423
      %v425 = vpop.f32.mrf.mxu0
      %426 = vmatprep.mubr.f32.mxu0 0.0
      %427 = vmatmul.mubr.f32.gmra.mxu0 %v332
      %v428 = vpop.f32.mrf.mxu0
      %v429 = vadd.f32 %v297, %v428
      %v430 = vpop.f32.mrf.mxu0
      %431 = vmatprep.mubr.f32.mxu0 0.0
      %432 = vmatmul.mubr.f32.gmra.mxu0 %v335
      %v433 = vpop.f32.mrf.mxu0
      %v434 = vadd.f32 %v302, %v433
      %v435 = vpop.f32.mrf.mxu0
      %436 = vmatprep.mubr.f32.mxu0 0.0
      %437 = vmatmul.mubr.f32.gmra.mxu0 %v338
      %v438 = vpop.f32.mrf.mxu0
      %v439 = vadd.f32 %v307, %v438
      %v440 = vpop.f32.mrf.mxu0
      %441 = vmatprep.mubr.f32.mxu0 0.0
      %442 = vmatmul.mubr.f32.gmra.mxu0 %v341
      %v443 = vpop.f32.mrf.mxu0
      %v444 = vadd.f32 %v312, %v443
      %v445 = vpop.f32.mrf.mxu0
      %446 = vmatprep.mubr.f32.mxu0 0.0
      %447 = vmatmul.mubr.f32.gmra.mxu0 %v344
      %v448 = vpop.f32.mrf.mxu0
      %v449 = vadd.f32 %v317, %v448
      %v450 = vpop.f32.mrf.mxu0
      %451 = vmatprep.mubr.f32.mxu0 0.0
      %452 = vmatmul.mubr.f32.gmra.mxu0 %v347
      %v453 = vpop.f32.mrf.mxu0
      %v454 = vadd.f32 %v322, %v453
      %v455 = vpop.f32.mrf.mxu0
      %456 = vdwg.mxu0
      %v457 = vld [vmem:[%s165 + $0x1] sm:$0xff]
      %v458 = vld [vmem:[%s165 + $0x11] sm:$0xff]
      %v459 = vld [vmem:[%s165 + $0x21] sm:$0xff]
      %v460 = vld [vmem:[%s165 + $0x31] sm:$0xff]
      %v461 = vld [vmem:[%s165 + $0x41] sm:$0xff]
      %v462 = vld [vmem:[%s165 + $0x51] sm:$0xff]
      %v463 = vld [vmem:[%s165 + $0x61] sm:$0xff]
      %v464 = vld [vmem:[%s165 + $0x71] sm:$0xff]
      %s465 = scalar_lea.vmem %s1, 8
      %v466 = vld [vmem:[%s465] sm:$0xf]
      %v468 = vsel %vm191, %v457, 0
      %v471 = vsel %vm191, %v458, 0
      %v474 = vsel %vm191, %v459, 0
      %v477 = vsel %vm191, %v460, 0
      %v480 = vsel %vm191, %v461, 0
      %v483 = vsel %vm191, %v462, 0
      %v486 = vsel %vm191, %v463, 0
      %v489 = vsel %vm191, %v464, 0
      %v492 = vsel %vm216, %v466, 0
      %494 = vmatprep.subr.mxu0 0.0
      %495 = vmatpush1.msra.mxu0 0.0
      %496 = vmatprep.subr.mxu0 0.0
      %497 = vmatpush1.msra.mxu0 0.0
      %498 = vmatprep.subr.mxu0 0.0
      %499 = vmatpush1.msra.mxu0 0.0
      %500 = vmatprep.subr.mxu0 0.0
      %501 = vmatpush1.msra.mxu0 0.0
      %502 = vmatprep.subr.mxu0 0.0
      %503 = vmatpush1.msra.mxu0 0.0
      %504 = vmatprep.subr.mxu0 0.0
      %505 = vmatpush1.msra.mxu0 0.0
      %506 = vmatprep.subr.mxu0 0.0
      %507 = vmatpush1.msra.mxu0 0.0
      %508 = vmatprep.subr.mxu0 0.0
      %509 = vmatpush1.msra.mxu0 0.0
      %510 = vmatprep.subr.mxu0 0.0
      %511 = vmatpush1.msra.mxu0 0.0
      %512 = vmatprep.subr.mxu0 0.0
      %513 = vmatpush1.msra.mxu0 0.0
      %514 = vmatprep.subr.mxu0 0.0
      %515 = vmatpush1.msra.mxu0 0.0
      %516 = vmatprep.subr.mxu0 0.0
      %517 = vmatpush1.msra.mxu0 0.0
      %518 = vmatprep.subr.mxu0 0.0
      %519 = vmatpush1.msra.mxu0 0.0
      %520 = vmatprep.subr.mxu0 0.0
      %521 = vmatpush1.msra.mxu0 0.0
      %522 = vmatprep.subr.mxu0 0.0
      %523 = vmatpush1.msra.mxu0 0.0
      %524 = vmatprep.subr.mxu0 0.0
      %525 = vmatpush1.msra.mxu0 %v492
      %526 = vmatprep.subr.mxu0 0.0
      %527 = vmatpush2.msra.mxu0 0.0
      %528 = vmatprep.subr.mxu0 0.0
      %529 = vmatpush2.msra.mxu0 0.0
      %530 = vmatprep.subr.mxu0 0.0
      %531 = vmatpush2.msra.mxu0 0.0
      %532 = vmatprep.subr.mxu0 0.0
      %533 = vmatpush2.msra.mxu0 0.0
      %534 = vmatprep.subr.mxu0 0.0
      %535 = vmatpush2.msra.mxu0 0.0
      %536 = vmatprep.subr.mxu0 0.0
      %537 = vmatpush2.msra.mxu0 0.0
      %538 = vmatprep.subr.mxu0 0.0
      %539 = vmatpush2.msra.mxu0 0.0
      %540 = vmatprep.subr.mxu0 0.0
      %541 = vmatpush2.msra.mxu0 0.0
      %542 = vmatprep.subr.mxu0 0.0
      %543 = vmatpush2.msra.mxu0 0.0
      %544 = vmatprep.subr.mxu0 0.0
      %545 = vmatpush2.msra.mxu0 0.0
      %546 = vmatprep.subr.mxu0 0.0
      %547 = vmatpush2.msra.mxu0 0.0
      %548 = vmatprep.subr.mxu0 0.0
      %549 = vmatpush2.msra.mxu0 0.0
      %550 = vmatprep.subr.mxu0 0.0
      %551 = vmatpush2.msra.mxu0 0.0
      %552 = vmatprep.subr.mxu0 0.0
      %553 = vmatpush2.msra.mxu0 0.0
      %554 = vmatprep.subr.mxu0 0.0
      %555 = vmatpush2.msra.mxu0 0.0
      %556 = vmatprep.subr.mxu0 0.0
      %557 = vmatpush2.msra.mxu0 0.0
      %558 = vmatprep.mubr.f32.mxu0 0.0
      %559 = vmatmul.mubr.f32.gmra.mxu0 %v468
      %v560 = vpop.f32.mrf.mxu0
      %v561 = vadd.f32 0.0, %v560
      %v562 = vpop.f32.mrf.mxu0
      %563 = vmatprep.mubr.f32.mxu0 0.0
      %564 = vmatmul.mubr.f32.gmra.mxu0 %v471
      %v565 = vpop.f32.mrf.mxu0
      %v566 = vadd.f32 0.0, %v565
      %v567 = vpop.f32.mrf.mxu0
      %568 = vmatprep.mubr.f32.mxu0 0.0
      %569 = vmatmul.mubr.f32.gmra.mxu0 %v474
      %v570 = vpop.f32.mrf.mxu0
      %v571 = vadd.f32 0.0, %v570
      %v572 = vpop.f32.mrf.mxu0
      %573 = vmatprep.mubr.f32.mxu0 0.0
      %574 = vmatmul.mubr.f32.gmra.mxu0 %v477
      %v575 = vpop.f32.mrf.mxu0
      %v576 = vadd.f32 0.0, %v575
      %v577 = vpop.f32.mrf.mxu0
      %578 = vmatprep.mubr.f32.mxu0 0.0
      %579 = vmatmul.mubr.f32.gmra.mxu0 %v480
      %v580 = vpop.f32.mrf.mxu0
      %v581 = vadd.f32 0.0, %v580
      %v582 = vpop.f32.mrf.mxu0
      %583 = vmatprep.mubr.f32.mxu0 0.0
      %584 = vmatmul.mubr.f32.gmra.mxu0 %v483
      %v585 = vpop.f32.mrf.mxu0
      %v586 = vadd.f32 0.0, %v585
      %v587 = vpop.f32.mrf.mxu0
      %588 = vmatprep.mubr.f32.mxu0 0.0
      %589 = vmatmul.mubr.f32.gmra.mxu0 %v486
      %v590 = vpop.f32.mrf.mxu0
      %v591 = vadd.f32 0.0, %v590
      %v592 = vpop.f32.mrf.mxu0
      %593 = vmatprep.mubr.f32.mxu0 0.0
      %594 = vmatmul.mubr.f32.gmra.mxu0 %v489
      %v595 = vpop.f32.mrf.mxu0
      %v596 = vadd.f32 0.0, %v595
      %v597 = vpop.f32.mrf.mxu0
      %598 = vdwg.mxu0
      %v599 = vadd.f32 %v419, %v561
      %v600 = vadd.f32 %v424, %v566
      %v601 = vadd.f32 %v429, %v571
      %v602 = vadd.f32 %v434, %v576
      %v603 = vadd.f32 %v439, %v581
      %v604 = vadd.f32 %v444, %v586
      %v605 = vadd.f32 %v449, %v591
      %v606 = vadd.f32 %v454, %v596
      %s607 = scalar_lea.vmem %s165, 288
      %v608 = vld [vmem:[%s607] sm:$0xff]
      %v609 = vld [vmem:[%s607 + $0x10] sm:$0xff]
      %v610 = vld [vmem:[%s607 + $0x20] sm:$0xff]
      %v611 = vld [vmem:[%s607 + $0x30] sm:$0xff]
      %v612 = vld [vmem:[%s607 + $0x40] sm:$0xff]
      %v613 = vld [vmem:[%s607 + $0x50] sm:$0xff]
      %v614 = vld [vmem:[%s607 + $0x60] sm:$0xff]
      %v615 = vld [vmem:[%s607 + $0x70] sm:$0xff]
      %s616 = scalar_lea.vmem %s1, 12
      %v617 = vld [vmem:[%s616] sm:$0xf]
      %v619 = vsel %vm191, %v608, 0
      %v622 = vsel %vm191, %v609, 0
      %v625 = vsel %vm191, %v610, 0
      %v628 = vsel %vm191, %v611, 0
      %v631 = vsel %vm191, %v612, 0
      %v634 = vsel %vm191, %v613, 0
      %v637 = vsel %vm191, %v614, 0
      %v640 = vsel %vm191, %v615, 0
      %v643 = vsel %vm216, %v617, 0
      %645 = vmatprep.subr.mxu0 0.0
      %646 = vmatpush1.msra.mxu0 0.0
      %647 = vmatprep.subr.mxu0 0.0
      %648 = vmatpush1.msra.mxu0 0.0
      %649 = vmatprep.subr.mxu0 0.0
      %650 = vmatpush1.msra.mxu0 0.0
      %651 = vmatprep.subr.mxu0 0.0
      %652 = vmatpush1.msra.mxu0 0.0
      %653 = vmatprep.subr.mxu0 0.0
      %654 = vmatpush1.msra.mxu0 0.0
      %655 = vmatprep.subr.mxu0 0.0
      %656 = vmatpush1.msra.mxu0 0.0
      %657 = vmatprep.subr.mxu0 0.0
      %658 = vmatpush1.msra.mxu0 0.0
      %659 = vmatprep.subr.mxu0 0.0
      %660 = vmatpush1.msra.mxu0 0.0
      %661 = vmatprep.subr.mxu0 0.0
      %662 = vmatpush1.msra.mxu0 0.0
      %663 = vmatprep.subr.mxu0 0.0
      %664 = vmatpush1.msra.mxu0 0.0
      %665 = vmatprep.subr.mxu0 0.0
      %666 = vmatpush1.msra.mxu0 0.0
      %667 = vmatprep.subr.mxu0 0.0
      %668 = vmatpush1.msra.mxu0 0.0
      %669 = vmatprep.subr.mxu0 0.0
      %670 = vmatpush1.msra.mxu0 0.0
      %671 = vmatprep.subr.mxu0 0.0
      %672 = vmatpush1.msra.mxu0 0.0
      %673 = vmatprep.subr.mxu0 0.0
      %674 = vmatpush1.msra.mxu0 0.0
      %675 = vmatprep.subr.mxu0 0.0
      %676 = vmatpush1.msra.mxu0 %v643
      %677 = vmatprep.subr.mxu0 0.0
      %678 = vmatpush2.msra.mxu0 0.0
      %679 = vmatprep.subr.mxu0 0.0
      %680 = vmatpush2.msra.mxu0 0.0
      %681 = vmatprep.subr.mxu0 0.0
      %682 = vmatpush2.msra.mxu0 0.0
      %683 = vmatprep.subr.mxu0 0.0
      %684 = vmatpush2.msra.mxu0 0.0
      %685 = vmatprep.subr.mxu0 0.0
      %686 = vmatpush2.msra.mxu0 0.0
      %687 = vmatprep.subr.mxu0 0.0
      %688 = vmatpush2.msra.mxu0 0.0
      %689 = vmatprep.subr.mxu0 0.0
      %690 = vmatpush2.msra.mxu0 0.0
      %691 = vmatprep.subr.mxu0 0.0
      %692 = vmatpush2.msra.mxu0 0.0
      %693 = vmatprep.subr.mxu0 0.0
      %694 = vmatpush2.msra.mxu0 0.0
      %695 = vmatprep.subr.mxu0 0.0
      %696 = vmatpush2.msra.mxu0 0.0
      %697 = vmatprep.subr.mxu0 0.0
      %698 = vmatpush2.msra.mxu0 0.0
      %699 = vmatprep.subr.mxu0 0.0
      %700 = vmatpush2.msra.mxu0 0.0
      %701 = vmatprep.subr.mxu0 0.0
      %702 = vmatpush2.msra.mxu0 0.0
      %703 = vmatprep.subr.mxu0 0.0
      %704 = vmatpush2.msra.mxu0 0.0
      %705 = vmatprep.subr.mxu0 0.0
      %706 = vmatpush2.msra.mxu0 0.0
      %707 = vmatprep.subr.mxu0 0.0
      %708 = vmatpush2.msra.mxu0 0.0
      %709 = vmatprep.mubr.f32.mxu0 0.0
      %710 = vmatmul.mubr.f32.gmra.mxu0 %v619
      %v711 = vpop.f32.mrf.mxu0
      %v712 = vadd.f32 0.0, %v711
      %v713 = vpop.f32.mrf.mxu0
      %714 = vmatprep.mubr.f32.mxu0 0.0
      %715 = vmatmul.mubr.f32.gmra.mxu0 %v622
      %v716 = vpop.f32.mrf.mxu0
      %v717 = vadd.f32 0.0, %v716
      %v718 = vpop.f32.mrf.mxu0
      %719 = vmatprep.mubr.f32.mxu0 0.0
      %720 = vmatmul.mubr.f32.gmra.mxu0 %v625
      %v721 = vpop.f32.mrf.mxu0
      %v722 = vadd.f32 0.0, %v721
      %v723 = vpop.f32.mrf.mxu0
      %724 = vmatprep.mubr.f32.mxu0 0.0
      %725 = vmatmul.mubr.f32.gmra.mxu0 %v628
      %v726 = vpop.f32.mrf.mxu0
      %v727 = vadd.f32 0.0, %v726
      %v728 = vpop.f32.mrf.mxu0
      %729 = vmatprep.mubr.f32.mxu0 0.0
      %730 = vmatmul.mubr.f32.gmra.mxu0 %v631
      %v731 = vpop.f32.mrf.mxu0
      %v732 = vadd.f32 0.0, %v731
      %v733 = vpop.f32.mrf.mxu0
      %734 = vmatprep.mubr.f32.mxu0 0.0
      %735 = vmatmul.mubr.f32.gmra.mxu0 %v634
      %v736 = vpop.f32.mrf.mxu0
      %v737 = vadd.f32 0.0, %v736
      %v738 = vpop.f32.mrf.mxu0
      %739 = vmatprep.mubr.f32.mxu0 0.0
      %740 = vmatmul.mubr.f32.gmra.mxu0 %v637
      %v741 = vpop.f32.mrf.mxu0
      %v742 = vadd.f32 0.0, %v741
      %v743 = vpop.f32.mrf.mxu0
      %744 = vmatprep.mubr.f32.mxu0 0.0
      %745 = vmatmul.mubr.f32.gmra.mxu0 %v640
      %v746 = vpop.f32.mrf.mxu0
      %v747 = vadd.f32 0.0, %v746
      %v748 = vpop.f32.mrf.mxu0
      %749 = vdwg.mxu0
      %v750 = vadd.f32 %v599, %v712
      %v751 = vadd.f32 %v600, %v717
      %v752 = vadd.f32 %v601, %v722
      %v753 = vadd.f32 %v602, %v727
      %v754 = vadd.f32 %v603, %v732
      %v755 = vadd.f32 %v604, %v737
      %v756 = vadd.f32 %v605, %v742
      %v757 = vadd.f32 %v606, %v747
      %s758 = scalar_lea.vmem %s165, 432
      %v759 = vld [vmem:[%s758] sm:$0xff]
      %v760 = vld [vmem:[%s758 + $0x10] sm:$0xff]
      %v761 = vld [vmem:[%s758 + $0x20] sm:$0xff]
      %v762 = vld [vmem:[%s758 + $0x30] sm:$0xff]
      %v763 = vld [vmem:[%s758 + $0x40] sm:$0xff]
      %v764 = vld [vmem:[%s758 + $0x50] sm:$0xff]
      %v765 = vld [vmem:[%s758 + $0x60] sm:$0xff]
      %v766 = vld [vmem:[%s758 + $0x70] sm:$0xff]
      %s767 = scalar_lea.vmem %s1, 16
      %v768 = vld [vmem:[%s767] sm:$0xf]
      %v770 = vsel %vm191, %v759, 0
      %v773 = vsel %vm191, %v760, 0
      %v776 = vsel %vm191, %v761, 0
      %v779 = vsel %vm191, %v762, 0
      %v782 = vsel %vm191, %v763, 0
      %v785 = vsel %vm191, %v764, 0
      %v788 = vsel %vm191, %v765, 0
      %v791 = vsel %vm191, %v766, 0
      %v794 = vsel %vm216, %v768, 0
      %796 = vmatprep.subr.mxu0 0.0
      %797 = vmatpush1.msra.mxu0 0.0
      %798 = vmatprep.subr.mxu0 0.0
      %799 = vmatpush1.msra.mxu0 0.0
      %800 = vmatprep.subr.mxu0 0.0
      %801 = vmatpush1.msra.mxu0 0.0
      %802 = vmatprep.subr.mxu0 0.0
      %803 = vmatpush1.msra.mxu0 0.0
      %804 = vmatprep.subr.mxu0 0.0
      %805 = vmatpush1.msra.mxu0 0.0
      %806 = vmatprep.subr.mxu0 0.0
      %807 = vmatpush1.msra.mxu0 0.0
      %808 = vmatprep.subr.mxu0 0.0
      %809 = vmatpush1.msra.mxu0 0.0
      %810 = vmatprep.subr.mxu0 0.0
      %811 = vmatpush1.msra.mxu0 0.0
      %812 = vmatprep.subr.mxu0 0.0
      %813 = vmatpush1.msra.mxu0 0.0
      %814 = vmatprep.subr.mxu0 0.0
      %815 = vmatpush1.msra.mxu0 0.0
      %816 = vmatprep.subr.mxu0 0.0
      %817 = vmatpush1.msra.mxu0 0.0
      %818 = vmatprep.subr.mxu0 0.0
      %819 = vmatpush1.msra.mxu0 0.0
      %820 = vmatprep.subr.mxu0 0.0
      %821 = vmatpush1.msra.mxu0 0.0
      %822 = vmatprep.subr.mxu0 0.0
      %823 = vmatpush1.msra.mxu0 0.0
      %824 = vmatprep.subr.mxu0 0.0
      %825 = vmatpush1.msra.mxu0 0.0
      %826 = vmatprep.subr.mxu0 0.0
      %827 = vmatpush1.msra.mxu0 %v794
      %828 = vmatprep.subr.mxu0 0.0
      %829 = vmatpush2.msra.mxu0 0.0
      %830 = vmatprep.subr.mxu0 0.0
      %831 = vmatpush2.msra.mxu0 0.0
      %832 = vmatprep.subr.mxu0 0.0
      %833 = vmatpush2.msra.mxu0 0.0
      %834 = vmatprep.subr.mxu0 0.0
      %835 = vmatpush2.msra.mxu0 0.0
      %836 = vmatprep.subr.mxu0 0.0
      %837 = vmatpush2.msra.mxu0 0.0
      %838 = vmatprep.subr.mxu0 0.0
      %839 = vmatpush2.msra.mxu0 0.0
      %840 = vmatprep.subr.mxu0 0.0
      %841 = vmatpush2.msra.mxu0 0.0
      %842 = vmatprep.subr.mxu0 0.0
      %843 = vmatpush2.msra.mxu0 0.0
      %844 = vmatprep.subr.mxu0 0.0
      %845 = vmatpush2.msra.mxu0 0.0
      %846 = vmatprep.subr.mxu0 0.0
      %847 = vmatpush2.msra.mxu0 0.0
      %848 = vmatprep.subr.mxu0 0.0
      %849 = vmatpush2.msra.mxu0 0.0
      %850 = vmatprep.subr.mxu0 0.0
      %851 = vmatpush2.msra.mxu0 0.0
      %852 = vmatprep.subr.mxu0 0.0
      %853 = vmatpush2.msra.mxu0 0.0
      %854 = vmatprep.subr.mxu0 0.0
      %855 = vmatpush2.msra.mxu0 0.0
      %856 = vmatprep.subr.mxu0 0.0
      %857 = vmatpush2.msra.mxu0 0.0
      %858 = vmatprep.subr.mxu0 0.0
      %859 = vmatpush2.msra.mxu0 0.0
      %860 = vmatprep.mubr.f32.mxu0 0.0
      %861 = vmatmul.mubr.f32.gmra.mxu0 %v770
      %v862 = vpop.f32.mrf.mxu0
      %v863 = vadd.f32 0.0, %v862
      %v864 = vpop.f32.mrf.mxu0
      %865 = vmatprep.mubr.f32.mxu0 0.0
      %866 = vmatmul.mubr.f32.gmra.mxu0 %v773
      %v867 = vpop.f32.mrf.mxu0
      %v868 = vadd.f32 0.0, %v867
      %v869 = vpop.f32.mrf.mxu0
      %870 = vmatprep.mubr.f32.mxu0 0.0
      %871 = vmatmul.mubr.f32.gmra.mxu0 %v776
      %v872 = vpop.f32.mrf.mxu0
      %v873 = vadd.f32 0.0, %v872
      %v874 = vpop.f32.mrf.mxu0
      %875 = vmatprep.mubr.f32.mxu0 0.0
      %876 = vmatmul.mubr.f32.gmra.mxu0 %v779
      %v877 = vpop.f32.mrf.mxu0
      %v878 = vadd.f32 0.0, %v877
      %v879 = vpop.f32.mrf.mxu0
      %880 = vmatprep.mubr.f32.mxu0 0.0
      %881 = vmatmul.mubr.f32.gmra.mxu0 %v782
      %v882 = vpop.f32.mrf.mxu0
      %v883 = vadd.f32 0.0, %v882
      %v884 = vpop.f32.mrf.mxu0
      %885 = vmatprep.mubr.f32.mxu0 0.0
      %886 = vmatmul.mubr.f32.gmra.mxu0 %v785
      %v887 = vpop.f32.mrf.mxu0
      %v888 = vadd.f32 0.0, %v887
      %v889 = vpop.f32.mrf.mxu0
      %890 = vmatprep.mubr.f32.mxu0 0.0
      %891 = vmatmul.mubr.f32.gmra.mxu0 %v788
      %v892 = vpop.f32.mrf.mxu0
      %v893 = vadd.f32 0.0, %v892
      %v894 = vpop.f32.mrf.mxu0
      %895 = vmatprep.mubr.f32.mxu0 0.0
      %896 = vmatmul.mubr.f32.gmra.mxu0 %v791
      %v897 = vpop.f32.mrf.mxu0
      %v898 = vadd.f32 0.0, %v897
      %v899 = vpop.f32.mrf.mxu0
      %900 = vdwg.mxu0
      %v901 = vadd.f32 %v750, %v863
      %v902 = vadd.f32 %v751, %v868
      %v903 = vadd.f32 %v752, %v873
      %v904 = vadd.f32 %v753, %v878
      %v905 = vadd.f32 %v754, %v883
      %v906 = vadd.f32 %v755, %v888
      %v907 = vadd.f32 %v756, %v893
      %v908 = vadd.f32 %v757, %v898
      %v909 = vld [vmem:[%s607 + $0x1] sm:$0xff]
      %v910 = vld [vmem:[%s607 + $0x11] sm:$0xff]
      %v911 = vld [vmem:[%s607 + $0x21] sm:$0xff]
      %v912 = vld [vmem:[%s607 + $0x31] sm:$0xff]
      %v913 = vld [vmem:[%s607 + $0x41] sm:$0xff]
      %v914 = vld [vmem:[%s607 + $0x51] sm:$0xff]
      %v915 = vld [vmem:[%s607 + $0x61] sm:$0xff]
      %v916 = vld [vmem:[%s607 + $0x71] sm:$0xff]
      %s917 = scalar_lea.vmem %s1, 20
      %v918 = vld [vmem:[%s917] sm:$0xf]
      %v920 = vsel %vm191, %v909, 0
      %v923 = vsel %vm191, %v910, 0
      %v926 = vsel %vm191, %v911, 0
      %v929 = vsel %vm191, %v912, 0
      %v932 = vsel %vm191, %v913, 0
      %v935 = vsel %vm191, %v914, 0
      %v938 = vsel %vm191, %v915, 0
      %v941 = vsel %vm191, %v916, 0
      %v944 = vsel %vm216, %v918, 0
      %946 = vmatprep.subr.mxu0 0.0
      %947 = vmatpush1.msra.mxu0 0.0
      %948 = vmatprep.subr.mxu0 0.0
      %949 = vmatpush1.msra.mxu0 0.0
      %950 = vmatprep.subr.mxu0 0.0
      %951 = vmatpush1.msra.mxu0 0.0
      %952 = vmatprep.subr.mxu0 0.0
      %953 = vmatpush1.msra.mxu0 0.0
      %954 = vmatprep.subr.mxu0 0.0
      %955 = vmatpush1.msra.mxu0 0.0
      %956 = vmatprep.subr.mxu0 0.0
      %957 = vmatpush1.msra.mxu0 0.0
      %958 = vmatprep.subr.mxu0 0.0
      %959 = vmatpush1.msra.mxu0 0.0
      %960 = vmatprep.subr.mxu0 0.0
      %961 = vmatpush1.msra.mxu0 0.0
      %962 = vmatprep.subr.mxu0 0.0
      %963 = vmatpush1.msra.mxu0 0.0
      %964 = vmatprep.subr.mxu0 0.0
      %965 = vmatpush1.msra.mxu0 0.0
      %966 = vmatprep.subr.mxu0 0.0
      %967 = vmatpush1.msra.mxu0 0.0
      %968 = vmatprep.subr.mxu0 0.0
      %969 = vmatpush1.msra.mxu0 0.0
      %970 = vmatprep.subr.mxu0 0.0
      %971 = vmatpush1.msra.mxu0 0.0
      %972 = vmatprep.subr.mxu0 0.0
      %973 = vmatpush1.msra.mxu0 0.0
      %974 = vmatprep.subr.mxu0 0.0
      %975 = vmatpush1.msra.mxu0 0.0
      %976 = vmatprep.subr.mxu0 0.0
      %977 = vmatpush1.msra.mxu0 %v944
      %978 = vmatprep.subr.mxu0 0.0
      %979 = vmatpush2.msra.mxu0 0.0
      %980 = vmatprep.subr.mxu0 0.0
      %981 = vmatpush2.msra.mxu0 0.0
      %982 = vmatprep.subr.mxu0 0.0
      %983 = vmatpush2.msra.mxu0 0.0
      %984 = vmatprep.subr.mxu0 0.0
      %985 = vmatpush2.msra.mxu0 0.0
      %986 = vmatprep.subr.mxu0 0.0
      %987 = vmatpush2.msra.mxu0 0.0
      %988 = vmatprep.subr.mxu0 0.0
      %989 = vmatpush2.msra.mxu0 0.0
      %990 = vmatprep.subr.mxu0 0.0
      %991 = vmatpush2.msra.mxu0 0.0
      %992 = vmatprep.subr.mxu0 0.0
      %993 = vmatpush2.msra.mxu0 0.0
      %994 = vmatprep.subr.mxu0 0.0
      %995 = vmatpush2.msra.mxu0 0.0
      %996 = vmatprep.subr.mxu0 0.0
      %997 = vmatpush2.msra.mxu0 0.0
      %998 = vmatprep.subr.mxu0 0.0
      %999 = vmatpush2.msra.mxu0 0.0
      %1000 = vmatprep.subr.mxu0 0.0
      %1001 = vmatpush2.msra.mxu0 0.0
      %1002 = vmatprep.subr.mxu0 0.0
      %1003 = vmatpush2.msra.mxu0 0.0
      %1004 = vmatprep.subr.mxu0 0.0
      %1005 = vmatpush2.msra.mxu0 0.0
      %1006 = vmatprep.subr.mxu0 0.0
      %1007 = vmatpush2.msra.mxu0 0.0
      %1008 = vmatprep.subr.mxu0 0.0
      %1009 = vmatpush2.msra.mxu0 0.0
      %1010 = vmatprep.mubr.f32.mxu0 0.0
      %1011 = vmatmul.mubr.f32.gmra.mxu0 %v920
      %v1012 = vpop.f32.mrf.mxu0
      %v1013 = vadd.f32 0.0, %v1012
      %v1014 = vpop.f32.mrf.mxu0
      %1015 = vmatprep.mubr.f32.mxu0 0.0
      %1016 = vmatmul.mubr.f32.gmra.mxu0 %v923
      %v1017 = vpop.f32.mrf.mxu0
      %v1018 = vadd.f32 0.0, %v1017
      %v1019 = vpop.f32.mrf.mxu0
      %1020 = vmatprep.mubr.f32.mxu0 0.0
      %1021 = vmatmul.mubr.f32.gmra.mxu0 %v926
      %v1022 = vpop.f32.mrf.mxu0
      %v1023 = vadd.f32 0.0, %v1022
      %v1024 = vpop.f32.mrf.mxu0
      %1025 = vmatprep.mubr.f32.mxu0 0.0
      %1026 = vmatmul.mubr.f32.gmra.mxu0 %v929
      %v1027 = vpop.f32.mrf.mxu0
      %v1028 = vadd.f32 0.0, %v1027
      %v1029 = vpop.f32.mrf.mxu0
      %1030 = vmatprep.mubr.f32.mxu0 0.0
      %1031 = vmatmul.mubr.f32.gmra.mxu0 %v932
      %v1032 = vpop.f32.mrf.mxu0
      %v1033 = vadd.f32 0.0, %v1032
      %v1034 = vpop.f32.mrf.mxu0
      %1035 = vmatprep.mubr.f32.mxu0 0.0
      %1036 = vmatmul.mubr.f32.gmra.mxu0 %v935
      %v1037 = vpop.f32.mrf.mxu0
      %v1038 = vadd.f32 0.0, %v1037
      %v1039 = vpop.f32.mrf.mxu0
      %1040 = vmatprep.mubr.f32.mxu0 0.0
      %1041 = vmatmul.mubr.f32.gmra.mxu0 %v938
      %v1042 = vpop.f32.mrf.mxu0
      %v1043 = vadd.f32 0.0, %v1042
      %v1044 = vpop.f32.mrf.mxu0
      %1045 = vmatprep.mubr.f32.mxu0 0.0
      %1046 = vmatmul.mubr.f32.gmra.mxu0 %v941
      %v1047 = vpop.f32.mrf.mxu0
      %v1048 = vadd.f32 0.0, %v1047
      %v1049 = vpop.f32.mrf.mxu0
      %1050 = vdwg.mxu0
      %v1051 = vadd.f32 %v901, %v1013
      %v1052 = vadd.f32 %v902, %v1018
      %v1053 = vadd.f32 %v903, %v1023
      %v1054 = vadd.f32 %v904, %v1028
      %v1055 = vadd.f32 %v905, %v1033
      %v1056 = vadd.f32 %v906, %v1038
      %v1057 = vadd.f32 %v907, %v1043
      %v1058 = vadd.f32 %v908, %v1048
      %s1059 = scalar_lea.vmem %s165, 16
      %v1060 = vld [vmem:[%s1059] sm:$0xff]
      %v1061 = vld [vmem:[%s1059 + $0x10] sm:$0xff]
      %v1062 = vld [vmem:[%s1059 + $0x20] sm:$0xff]
      %v1063 = vld [vmem:[%s1059 + $0x30] sm:$0xff]
      %v1064 = vld [vmem:[%s1059 + $0x40] sm:$0xff]
      %v1065 = vld [vmem:[%s1059 + $0x50] sm:$0xff]
      %v1066 = vld [vmem:[%s1059 + $0x60] sm:$0xff]
      %v1067 = vld [vmem:[%s1059 + $0x70] sm:$0xff]
      %s1068 = scalar_lea.vmem %s1, 24
      %v1069 = vld [vmem:[%s1068] sm:$0xf]
      %v1071 = vsel %vm191, %v1060, 0
      %v1074 = vsel %vm191, %v1061, 0
      %v1077 = vsel %vm191, %v1062, 0
      %v1080 = vsel %vm191, %v1063, 0
      %v1083 = vsel %vm191, %v1064, 0
      %v1086 = vsel %vm191, %v1065, 0
      %v1089 = vsel %vm191, %v1066, 0
      %v1092 = vsel %vm191, %v1067, 0
      %v1095 = vsel %vm216, %v1069, 0
      %1097 = vmatprep.subr.mxu0 0.0
      %1098 = vmatpush1.msra.mxu0 0.0
      %1099 = vmatprep.subr.mxu0 0.0
      %1100 = vmatpush1.msra.mxu0 0.0
      %1101 = vmatprep.subr.mxu0 0.0
      %1102 = vmatpush1.msra.mxu0 0.0
      %1103 = vmatprep.subr.mxu0 0.0
      %1104 = vmatpush1.msra.mxu0 0.0
      %1105 = vmatprep.subr.mxu0 0.0
      %1106 = vmatpush1.msra.mxu0 0.0
      %1107 = vmatprep.subr.mxu0 0.0
      %1108 = vmatpush1.msra.mxu0 0.0
      %1109 = vmatprep.subr.mxu0 0.0
      %1110 = vmatpush1.msra.mxu0 0.0
      %1111 = vmatprep.subr.mxu0 0.0
      %1112 = vmatpush1.msra.mxu0 0.0
      %1113 = vmatprep.subr.mxu0 0.0
      %1114 = vmatpush1.msra.mxu0 0.0
      %1115 = vmatprep.subr.mxu0 0.0
      %1116 = vmatpush1.msra.mxu0 0.0
      %1117 = vmatprep.subr.mxu0 0.0
      %1118 = vmatpush1.msra.mxu0 0.0
      %1119 = vmatprep.subr.mxu0 0.0
      %1120 = vmatpush1.msra.mxu0 0.0
      %1121 = vmatprep.subr.mxu0 0.0
      %1122 = vmatpush1.msra.mxu0 0.0
      %1123 = vmatprep.subr.mxu0 0.0
      %1124 = vmatpush1.msra.mxu0 0.0
      %1125 = vmatprep.subr.mxu0 0.0
      %1126 = vmatpush1.msra.mxu0 0.0
      %1127 = vmatprep.subr.mxu0 0.0
      %1128 = vmatpush1.msra.mxu0 %v1095
      %1129 = vmatprep.subr.mxu0 0.0
      %1130 = vmatpush2.msra.mxu0 0.0
      %1131 = vmatprep.subr.mxu0 0.0
      %1132 = vmatpush2.msra.mxu0 0.0
      %1133 = vmatprep.subr.mxu0 0.0
      %1134 = vmatpush2.msra.mxu0 0.0
      %1135 = vmatprep.subr.mxu0 0.0
      %1136 = vmatpush2.msra.mxu0 0.0
      %1137 = vmatprep.subr.mxu0 0.0
      %1138 = vmatpush2.msra.mxu0 0.0
      %1139 = vmatprep.subr.mxu0 0.0
      %1140 = vmatpush2.msra.mxu0 0.0
      %1141 = vmatprep.subr.mxu0 0.0
      %1142 = vmatpush2.msra.mxu0 0.0
      %1143 = vmatprep.subr.mxu0 0.0
      %1144 = vmatpush2.msra.mxu0 0.0
      %1145 = vmatprep.subr.mxu0 0.0
      %1146 = vmatpush2.msra.mxu0 0.0
      %1147 = vmatprep.subr.mxu0 0.0
      %1148 = vmatpush2.msra.mxu0 0.0
      %1149 = vmatprep.subr.mxu0 0.0
      %1150 = vmatpush2.msra.mxu0 0.0
      %1151 = vmatprep.subr.mxu0 0.0
      %1152 = vmatpush2.msra.mxu0 0.0
      %1153 = vmatprep.subr.mxu0 0.0
      %1154 = vmatpush2.msra.mxu0 0.0
      %1155 = vmatprep.subr.mxu0 0.0
      %1156 = vmatpush2.msra.mxu0 0.0
      %1157 = vmatprep.subr.mxu0 0.0
      %1158 = vmatpush2.msra.mxu0 0.0
      %1159 = vmatprep.subr.mxu0 0.0
      %1160 = vmatpush2.msra.mxu0 0.0
      %1161 = vmatprep.mubr.f32.mxu0 0.0
      %1162 = vmatmul.mubr.f32.gmra.mxu0 %v1071
      %v1163 = vpop.f32.mrf.mxu0
      %v1164 = vadd.f32 0.0, %v1163
      %v1165 = vpop.f32.mrf.mxu0
      %1166 = vmatprep.mubr.f32.mxu0 0.0
      %1167 = vmatmul.mubr.f32.gmra.mxu0 %v1074
      %v1168 = vpop.f32.mrf.mxu0
      %v1169 = vadd.f32 0.0, %v1168
      %v1170 = vpop.f32.mrf.mxu0
      %1171 = vmatprep.mubr.f32.mxu0 0.0
      %1172 = vmatmul.mubr.f32.gmra.mxu0 %v1077
      %v1173 = vpop.f32.mrf.mxu0
      %v1174 = vadd.f32 0.0, %v1173
      %v1175 = vpop.f32.mrf.mxu0
      %1176 = vmatprep.mubr.f32.mxu0 0.0
      %1177 = vmatmul.mubr.f32.gmra.mxu0 %v1080
      %v1178 = vpop.f32.mrf.mxu0
      %v1179 = vadd.f32 0.0, %v1178
      %v1180 = vpop.f32.mrf.mxu0
      %1181 = vmatprep.mubr.f32.mxu0 0.0
      %1182 = vmatmul.mubr.f32.gmra.mxu0 %v1083
      %v1183 = vpop.f32.mrf.mxu0
      %v1184 = vadd.f32 0.0, %v1183
      %v1185 = vpop.f32.mrf.mxu0
      %1186 = vmatprep.mubr.f32.mxu0 0.0
      %1187 = vmatmul.mubr.f32.gmra.mxu0 %v1086
      %v1188 = vpop.f32.mrf.mxu0
      %v1189 = vadd.f32 0.0, %v1188
      %v1190 = vpop.f32.mrf.mxu0
      %1191 = vmatprep.mubr.f32.mxu0 0.0
      %1192 = vmatmul.mubr.f32.gmra.mxu0 %v1089
      %v1193 = vpop.f32.mrf.mxu0
      %v1194 = vadd.f32 0.0, %v1193
      %v1195 = vpop.f32.mrf.mxu0
      %1196 = vmatprep.mubr.f32.mxu0 0.0
      %1197 = vmatmul.mubr.f32.gmra.mxu0 %v1092
      %v1198 = vpop.f32.mrf.mxu0
      %v1199 = vadd.f32 0.0, %v1198
      %v1200 = vpop.f32.mrf.mxu0
      %1201 = vdwg.mxu0
      %v1202 = vadd.f32 %v1051, %v1164
      %v1203 = vadd.f32 %v1052, %v1169
      %v1204 = vadd.f32 %v1053, %v1174
      %v1205 = vadd.f32 %v1054, %v1179
      %v1206 = vadd.f32 %v1055, %v1184
      %v1207 = vadd.f32 %v1056, %v1189
      %v1208 = vadd.f32 %v1057, %v1194
      %v1209 = vadd.f32 %v1058, %v1199
      %s1210 = scalar_lea.vmem %s165, 160
      %v1211 = vld [vmem:[%s1210] sm:$0xff]
      %v1212 = vld [vmem:[%s1210 + $0x10] sm:$0xff]
      %v1213 = vld [vmem:[%s1210 + $0x20] sm:$0xff]
      %v1214 = vld [vmem:[%s1210 + $0x30] sm:$0xff]
      %v1215 = vld [vmem:[%s1210 + $0x40] sm:$0xff]
      %v1216 = vld [vmem:[%s1210 + $0x50] sm:$0xff]
      %v1217 = vld [vmem:[%s1210 + $0x60] sm:$0xff]
      %v1218 = vld [vmem:[%s1210 + $0x70] sm:$0xff]
      %s1219 = scalar_lea.vmem %s1, 28
      %v1220 = vld [vmem:[%s1219] sm:$0xf]
      %v1222 = vsel %vm191, %v1211, 0
      %v1225 = vsel %vm191, %v1212, 0
      %v1228 = vsel %vm191, %v1213, 0
      %v1231 = vsel %vm191, %v1214, 0
      %v1234 = vsel %vm191, %v1215, 0
      %v1237 = vsel %vm191, %v1216, 0
      %v1240 = vsel %vm191, %v1217, 0
      %v1243 = vsel %vm191, %v1218, 0
      %v1246 = vsel %vm216, %v1220, 0
      %1248 = vmatprep.subr.mxu0 0.0
      %1249 = vmatpush1.msra.mxu0 0.0
      %1250 = vmatprep.subr.mxu0 0.0
      %1251 = vmatpush1.msra.mxu0 0.0
      %1252 = vmatprep.subr.mxu0 0.0
      %1253 = vmatpush1.msra.mxu0 0.0
      %1254 = vmatprep.subr.mxu0 0.0
      %1255 = vmatpush1.msra.mxu0 0.0
      %1256 = vmatprep.subr.mxu0 0.0
      %1257 = vmatpush1.msra.mxu0 0.0
      %1258 = vmatprep.subr.mxu0 0.0
      %1259 = vmatpush1.msra.mxu0 0.0
      %1260 = vmatprep.subr.mxu0 0.0
      %1261 = vmatpush1.msra.mxu0 0.0
      %1262 = vmatprep.subr.mxu0 0.0
      %1263 = vmatpush1.msra.mxu0 0.0
      %1264 = vmatprep.subr.mxu0 0.0
      %1265 = vmatpush1.msra.mxu0 0.0
      %1266 = vmatprep.subr.mxu0 0.0
      %1267 = vmatpush1.msra.mxu0 0.0
      %1268 = vmatprep.subr.mxu0 0.0
      %1269 = vmatpush1.msra.mxu0 0.0
      %1270 = vmatprep.subr.mxu0 0.0
      %1271 = vmatpush1.msra.mxu0 0.0
      %1272 = vmatprep.subr.mxu0 0.0
      %1273 = vmatpush1.msra.mxu0 0.0
      %1274 = vmatprep.subr.mxu0 0.0
      %1275 = vmatpush1.msra.mxu0 0.0
      %1276 = vmatprep.subr.mxu0 0.0
      %1277 = vmatpush1.msra.mxu0 0.0
      %1278 = vmatprep.subr.mxu0 0.0
      %1279 = vmatpush1.msra.mxu0 %v1246
      %1280 = vmatprep.subr.mxu0 0.0
      %1281 = vmatpush2.msra.mxu0 0.0
      %1282 = vmatprep.subr.mxu0 0.0
      %1283 = vmatpush2.msra.mxu0 0.0
      %1284 = vmatprep.subr.mxu0 0.0
      %1285 = vmatpush2.msra.mxu0 0.0
      %1286 = vmatprep.subr.mxu0 0.0
      %1287 = vmatpush2.msra.mxu0 0.0
      %1288 = vmatprep.subr.mxu0 0.0
      %1289 = vmatpush2.msra.mxu0 0.0
      %1290 = vmatprep.subr.mxu0 0.0
      %1291 = vmatpush2.msra.mxu0 0.0
      %1292 = vmatprep.subr.mxu0 0.0
      %1293 = vmatpush2.msra.mxu0 0.0
      %1294 = vmatprep.subr.mxu0 0.0
      %1295 = vmatpush2.msra.mxu0 0.0
      %1296 = vmatprep.subr.mxu0 0.0
      %1297 = vmatpush2.msra.mxu0 0.0
      %1298 = vmatprep.subr.mxu0 0.0
      %1299 = vmatpush2.msra.mxu0 0.0
      %1300 = vmatprep.subr.mxu0 0.0
      %1301 = vmatpush2.msra.mxu0 0.0
      %1302 = vmatprep.subr.mxu0 0.0
      %1303 = vmatpush2.msra.mxu0 0.0
      %1304 = vmatprep.subr.mxu0 0.0
      %1305 = vmatpush2.msra.mxu0 0.0
      %1306 = vmatprep.subr.mxu0 0.0
      %1307 = vmatpush2.msra.mxu0 0.0
      %1308 = vmatprep.subr.mxu0 0.0
      %1309 = vmatpush2.msra.mxu0 0.0
      %1310 = vmatprep.subr.mxu0 0.0
      %1311 = vmatpush2.msra.mxu0 0.0
      %1312 = vmatprep.mubr.f32.mxu0 0.0
      %1313 = vmatmul.mubr.f32.gmra.mxu0 %v1222
      %v1314 = vpop.f32.mrf.mxu0
      %v1315 = vadd.f32 0.0, %v1314
      %v1316 = vpop.f32.mrf.mxu0
      %1317 = vmatprep.mubr.f32.mxu0 0.0
      %1318 = vmatmul.mubr.f32.gmra.mxu0 %v1225
      %v1319 = vpop.f32.mrf.mxu0
      %v1320 = vadd.f32 0.0, %v1319
      %v1321 = vpop.f32.mrf.mxu0
      %1322 = vmatprep.mubr.f32.mxu0 0.0
      %1323 = vmatmul.mubr.f32.gmra.mxu0 %v1228
      %v1324 = vpop.f32.mrf.mxu0
      %v1325 = vadd.f32 0.0, %v1324
      %v1326 = vpop.f32.mrf.mxu0
      %1327 = vmatprep.mubr.f32.mxu0 0.0
      %1328 = vmatmul.mubr.f32.gmra.mxu0 %v1231
      %v1329 = vpop.f32.mrf.mxu0
      %v1330 = vadd.f32 0.0, %v1329
      %v1331 = vpop.f32.mrf.mxu0
      %1332 = vmatprep.mubr.f32.mxu0 0.0
      %1333 = vmatmul.mubr.f32.gmra.mxu0 %v1234
      %v1334 = vpop.f32.mrf.mxu0
      %v1335 = vadd.f32 0.0, %v1334
      %v1336 = vpop.f32.mrf.mxu0
      %1337 = vmatprep.mubr.f32.mxu0 0.0
      %1338 = vmatmul.mubr.f32.gmra.mxu0 %v1237
      %v1339 = vpop.f32.mrf.mxu0
      %v1340 = vadd.f32 0.0, %v1339
      %v1341 = vpop.f32.mrf.mxu0
      %1342 = vmatprep.mubr.f32.mxu0 0.0
      %1343 = vmatmul.mubr.f32.gmra.mxu0 %v1240
      %v1344 = vpop.f32.mrf.mxu0
      %v1345 = vadd.f32 0.0, %v1344
      %v1346 = vpop.f32.mrf.mxu0
      %1347 = vmatprep.mubr.f32.mxu0 0.0
      %1348 = vmatmul.mubr.f32.gmra.mxu0 %v1243
      %v1349 = vpop.f32.mrf.mxu0
      %v1350 = vadd.f32 0.0, %v1349
      %v1351 = vpop.f32.mrf.mxu0
      %1352 = vdwg.mxu0
      %v1353 = vadd.f32 %v1202, %v1315
      %v1354 = vadd.f32 %v1203, %v1320
      %v1355 = vadd.f32 %v1204, %v1325
      %v1356 = vadd.f32 %v1205, %v1330
      %v1357 = vadd.f32 %v1206, %v1335
      %v1358 = vadd.f32 %v1207, %v1340
      %v1359 = vadd.f32 %v1208, %v1345
      %v1360 = vadd.f32 %v1209, %v1350
      %v1361 = vld [vmem:[%s1059 + $0x1] sm:$0xff]
      %v1362 = vld [vmem:[%s1059 + $0x11] sm:$0xff]
      %v1363 = vld [vmem:[%s1059 + $0x21] sm:$0xff]
      %v1364 = vld [vmem:[%s1059 + $0x31] sm:$0xff]
      %v1365 = vld [vmem:[%s1059 + $0x41] sm:$0xff]
      %v1366 = vld [vmem:[%s1059 + $0x51] sm:$0xff]
      %v1367 = vld [vmem:[%s1059 + $0x61] sm:$0xff]
      %v1368 = vld [vmem:[%s1059 + $0x71] sm:$0xff]
      %s1369 = scalar_lea.vmem %s1, 32
      %v1370 = vld [vmem:[%s1369] sm:$0xf]
      %v1372 = vsel %vm191, %v1361, 0
      %v1375 = vsel %vm191, %v1362, 0
      %v1378 = vsel %vm191, %v1363, 0
      %v1381 = vsel %vm191, %v1364, 0
      %v1384 = vsel %vm191, %v1365, 0
      %v1387 = vsel %vm191, %v1366, 0
      %v1390 = vsel %vm191, %v1367, 0
      %v1393 = vsel %vm191, %v1368, 0
      %v1396 = vsel %vm216, %v1370, 0
      %1398 = vmatprep.subr.mxu0 0.0
      %1399 = vmatpush1.msra.mxu0 0.0
      %1400 = vmatprep.subr.mxu0 0.0
      %1401 = vmatpush1.msra.mxu0 0.0
      %1402 = vmatprep.subr.mxu0 0.0
      %1403 = vmatpush1.msra.mxu0 0.0
      %1404 = vmatprep.subr.mxu0 0.0
      %1405 = vmatpush1.msra.mxu0 0.0
      %1406 = vmatprep.subr.mxu0 0.0
      %1407 = vmatpush1.msra.mxu0 0.0
      %1408 = vmatprep.subr.mxu0 0.0
      %1409 = vmatpush1.msra.mxu0 0.0
      %1410 = vmatprep.subr.mxu0 0.0
      %1411 = vmatpush1.msra.mxu0 0.0
      %1412 = vmatprep.subr.mxu0 0.0
      %1413 = vmatpush1.msra.mxu0 0.0
      %1414 = vmatprep.subr.mxu0 0.0
      %1415 = vmatpush1.msra.mxu0 0.0
      %1416 = vmatprep.subr.mxu0 0.0
      %1417 = vmatpush1.msra.mxu0 0.0
      %1418 = vmatprep.subr.mxu0 0.0
      %1419 = vmatpush1.msra.mxu0 0.0
      %1420 = vmatprep.subr.mxu0 0.0
      %1421 = vmatpush1.msra.mxu0 0.0
      %1422 = vmatprep.subr.mxu0 0.0
      %1423 = vmatpush1.msra.mxu0 0.0
      %1424 = vmatprep.subr.mxu0 0.0
      %1425 = vmatpush1.msra.mxu0 0.0
      %1426 = vmatprep.subr.mxu0 0.0
      %1427 = vmatpush1.msra.mxu0 0.0
      %1428 = vmatprep.subr.mxu0 0.0
      %1429 = vmatpush1.msra.mxu0 %v1396
      %1430 = vmatprep.subr.mxu0 0.0
      %1431 = vmatpush2.msra.mxu0 0.0
      %1432 = vmatprep.subr.mxu0 0.0
      %1433 = vmatpush2.msra.mxu0 0.0
      %1434 = vmatprep.subr.mxu0 0.0
      %1435 = vmatpush2.msra.mxu0 0.0
      %1436 = vmatprep.subr.mxu0 0.0
      %1437 = vmatpush2.msra.mxu0 0.0
      %1438 = vmatprep.subr.mxu0 0.0
      %1439 = vmatpush2.msra.mxu0 0.0
      %1440 = vmatprep.subr.mxu0 0.0
      %1441 = vmatpush2.msra.mxu0 0.0
      %1442 = vmatprep.subr.mxu0 0.0
      %1443 = vmatpush2.msra.mxu0 0.0
      %1444 = vmatprep.subr.mxu0 0.0
      %1445 = vmatpush2.msra.mxu0 0.0
      %1446 = vmatprep.subr.mxu0 0.0
      %1447 = vmatpush2.msra.mxu0 0.0
      %1448 = vmatprep.subr.mxu0 0.0
      %1449 = vmatpush2.msra.mxu0 0.0
      %1450 = vmatprep.subr.mxu0 0.0
      %1451 = vmatpush2.msra.mxu0 0.0
      %1452 = vmatprep.subr.mxu0 0.0
      %1453 = vmatpush2.msra.mxu0 0.0
      %1454 = vmatprep.subr.mxu0 0.0
      %1455 = vmatpush2.msra.mxu0 0.0
      %1456 = vmatprep.subr.mxu0 0.0
      %1457 = vmatpush2.msra.mxu0 0.0
      %1458 = vmatprep.subr.mxu0 0.0
      %1459 = vmatpush2.msra.mxu0 0.0
      %1460 = vmatprep.subr.mxu0 0.0
      %1461 = vmatpush2.msra.mxu0 0.0
      %1462 = vmatprep.mubr.f32.mxu0 0.0
      %1463 = vmatmul.mubr.f32.gmra.mxu0 %v1372
      %v1464 = vpop.f32.mrf.mxu0
      %v1465 = vadd.f32 0.0, %v1464
      %v1466 = vpop.f32.mrf.mxu0
      %1467 = vmatprep.mubr.f32.mxu0 0.0
      %1468 = vmatmul.mubr.f32.gmra.mxu0 %v1375
      %v1469 = vpop.f32.mrf.mxu0
      %v1470 = vadd.f32 0.0, %v1469
      %v1471 = vpop.f32.mrf.mxu0
      %1472 = vmatprep.mubr.f32.mxu0 0.0
      %1473 = vmatmul.mubr.f32.gmra.mxu0 %v1378
      %v1474 = vpop.f32.mrf.mxu0
      %v1475 = vadd.f32 0.0, %v1474
      %v1476 = vpop.f32.mrf.mxu0
      %1477 = vmatprep.mubr.f32.mxu0 0.0
      %1478 = vmatmul.mubr.f32.gmra.mxu0 %v1381
      %v1479 = vpop.f32.mrf.mxu0
      %v1480 = vadd.f32 0.0, %v1479
      %v1481 = vpop.f32.mrf.mxu0
      %1482 = vmatprep.mubr.f32.mxu0 0.0
      %1483 = vmatmul.mubr.f32.gmra.mxu0 %v1384
      %v1484 = vpop.f32.mrf.mxu0
      %v1485 = vadd.f32 0.0, %v1484
      %v1486 = vpop.f32.mrf.mxu0
      %1487 = vmatprep.mubr.f32.mxu0 0.0
      %1488 = vmatmul.mubr.f32.gmra.mxu0 %v1387
      %v1489 = vpop.f32.mrf.mxu0
      %v1490 = vadd.f32 0.0, %v1489
      %v1491 = vpop.f32.mrf.mxu0
      %1492 = vmatprep.mubr.f32.mxu0 0.0
      %1493 = vmatmul.mubr.f32.gmra.mxu0 %v1390
      %v1494 = vpop.f32.mrf.mxu0
      %v1495 = vadd.f32 0.0, %v1494
      %v1496 = vpop.f32.mrf.mxu0
      %1497 = vmatprep.mubr.f32.mxu0 0.0
      %1498 = vmatmul.mubr.f32.gmra.mxu0 %v1393
      %v1499 = vpop.f32.mrf.mxu0
      %v1500 = vadd.f32 0.0, %v1499
      %v1501 = vpop.f32.mrf.mxu0
      %1502 = vdwg.mxu0
      %v1503 = vadd.f32 %v1353, %v1465
      %v1504 = vadd.f32 %v1354, %v1470
      %v1505 = vadd.f32 %v1355, %v1475
      %v1506 = vadd.f32 %v1356, %v1480
      %v1507 = vadd.f32 %v1357, %v1485
      %v1508 = vadd.f32 %v1358, %v1490
      %v1509 = vadd.f32 %v1359, %v1495
      %v1510 = vadd.f32 %v1360, %v1500
      %v1511 = vld [vmem:[%s2] sm:$0x1]
      %v1513 = vlaneseq
      %v1514 = vshrl.u32 %v1513, 7
      %v1515 = vsub.s32 0, %v1514
      %v1516 = vrot.slane %v1511, %v1515
      %v1518 = vadd.f32 %v1503, %v1516
      %v1519 = vadd.f32 %v1504, %v1516
      %v1520 = vadd.f32 %v1505, %v1516
      %v1521 = vadd.f32 %v1506, %v1516
      %v1522 = vadd.f32 %v1507, %v1516
      %v1523 = vadd.f32 %v1508, %v1516
      %v1524 = vadd.f32 %v1509, %v1516
      %v1525 = vadd.f32 %v1510, %v1516
      %1526 = vst.msk [vmem:[%s170] sm:$0xff] %vm191, %v1518
      %1527 = vst.msk [vmem:[%s170 + $0x8] sm:$0xff] %vm191, %v1519
      %1528 = vst.msk [vmem:[%s170 + $0x10] sm:$0xff] %vm191, %v1520
      %1529 = vst.msk [vmem:[%s170 + $0x18] sm:$0xff] %vm191, %v1521
      %1530 = vst.msk [vmem:[%s170 + $0x20] sm:$0xff] %vm191, %v1522
      %1531 = vst.msk [vmem:[%s170 + $0x28] sm:$0xff] %vm191, %v1523
      %1532 = vst.msk [vmem:[%s170 + $0x30] sm:$0xff] %vm191, %v1524
      %1533 = vst.msk [vmem:[%s170 + $0x38] sm:$0xff] %vm191, %v1525
      %p1534 = scmp.lt.s32.totalorder %s14, 1
      %s1535 = scalar_select %p1534, %s14, 1
      %s1536 = smul.addr %s1535, 8
      %s1537 = smul.addr %s1536, 8
      %s1538 = scalar_lea.vmem %s3, %s1537
      // Predicated region
      $region33: #{downsample_with_asymmetric_padding.1} parent=31 // pred_check
        %p1539 = pneg %p100
      $region34: #{downsample_with_asymmetric_padding.1} parent=31 // pred_check_branch
        %1541 = sbr.rel (%p1539) target = $region36
      $region35: #{downsample_with_asymmetric_padding.1} parent=31 // pred_region
        _
      $region36: #{downsample_with_asymmetric_padding.1} parent=31 // pred_fallthru
        _
    $region32: #{downsample_with_asymmetric_padding.1} parent=5 // pred_fallthru
      _
    %p1542 = scmp.le.s32.totalorder 2, %s9
    // Predicated region
    $region37: #{downsample_with_asymmetric_padding.1} parent=5 // pred_check
      %p1543 = pneg %p1542
    $region38: #{downsample_with_asymmetric_padding.1} parent=5 // pred_check_branch
      %1545 = sbr.rel (%p1543) target = $region40
    $region39: #{downsample_with_asymmetric_padding.1} parent=5 // pred_region
      %s1546 = ssub.s32 %s9, 2
      // Predicated region
      $region41: #{downsample_with_asymmetric_padding.1} parent=39 // pred_check
        %p1547 = pneg %p106
      $region42: #{downsample_with_asymmetric_padding.1} parent=39 // pred_check_branch
        %1549 = sbr.rel (%p1547) target = $region44
      $region43: #{downsample_with_asymmetric_padding.1} parent=39 // pred_region
        %p1550 = scmp.lt.s32.totalorder %s15, 1
        %s1551 = scalar_select %p1550, %s15, 1
        %s1552 = smul.addr %s1551, 8
        %s1553 = smul.addr %s1552, 8
        %s1554 = scalar_lea.vmem %s3, %s1553
      $region44: #{downsample_with_asymmetric_padding.1} parent=39 // pred_fallthru
        _
    $region40: #{downsample_with_asymmetric_padding.1} parent=5 // pred_fallthru
      _
  $region6: #{downsample_with_asymmetric_padding.1} parent=0 // loop_footer
    %s13 = sadd.s32 1, %s9
  $region7: #{downsample_with_asymmetric_padding.1} parent=0 // loop_footer_branch
    %8 = sbr.rel target = $region3
  $region8: #{downsample_with_asymmetric_padding.1} parent=0 // loop_exit
    _

</llo_original>
